<compile_context>
chip_gen: v5e
topology: v5e:2x2
jax: 0.10.0
libtpu: 0.0.40
codegen_flags: <defaults>
</compile_context>

<pallas_src>
import functools

import jax
import jax.numpy as jnp
import numpy as np
from jax import lax
from jax.experimental import pallas as pl
from jax.experimental.pallas import tpu as pltpu


# ---------------------------------------------------------------------------
# Fused forward kernel.  One grid step = one view-1 output window `b`.
# ---------------------------------------------------------------------------
def _fused_kernel(x1_ref, x2_ref, wq_ref, bq_ref, wkv_ref, bkv_ref, bias_ref,
                  wp_ref, bp_ref, attn_ref, x_ref, *, num_heads, ratio, head_dim):
    """
    x1_ref  : (B1, N, C)        all view-1 windows (VMEM-resident, constant index)
    x2_ref  : (ratio, N, C)     view-2 windows b*ratio .. b*ratio+ratio-1
    wq_ref  : (C, C)            qkv1 weight^T, pre-scaled by qk scale
    bq_ref  : (1, C)            qkv1 bias, pre-scaled by qk scale
    wkv_ref : (C, 2C)           qkv2 weight^T
    bkv_ref : (1, 2C)           qkv2 bias
    bias_ref: (H, N, N)         relative-position bias (pre-gathered)
    wp_ref  : (C, C)            proj weight^T
    bp_ref  : (1, C)            proj bias
    attn_ref: (ratio, H, N, N)  softmax probabilities (module output #2)
    x_ref   : (1, N, C)         projected output for window b (module output #1)
    """
    b = pl.program_id(0)
    B1 = x1_ref.shape[0]
    N = x1_ref.shape[1]
    C = num_heads * head_dim

    # f32 accumulator: head-merged attn@v, summed over the `ratio` sub-windows.
    o_acc = jnp.zeros((N, C), jnp.float32)

    for r in range(ratio):
        # Global view-2 window index is b2 = b*ratio + r.  The reference tiles
        # q with torch `.repeat(ratio, 1, 1, 1)`, so window b2 uses
        # q[(b*ratio + r) % B1]; x1 is fully VMEM-resident so pick the row
        # dynamically and recompute its (tiny) projection.
        qi = (b * ratio + r) % B1
        q = jnp.dot(x1_ref[qi], wq_ref[...],
                    preferred_element_type=jnp.float32) + bq_ref[...]        # (N, C)
        kv = jnp.dot(x2_ref[r], wkv_ref[...],
                     preferred_element_type=jnp.float32) + bkv_ref[...]      # (N, 2C)

        heads_out = []
        for h in range(num_heads):
            lo, hi = h * head_dim, (h + 1) * head_dim
            qh = q[:, lo:hi]                        # (N, Dh)
            kh = kv[:, lo:hi]                       # (N, Dh)
            vh = kv[:, C + lo:C + hi]               # (N, Dh)

            # scores = q @ k^T + relative position bias        (N, N)
            s = lax.dot_general(qh, kh, (((1,), (1,)), ((), ())),
                                preferred_element_type=jnp.float32)
            s = s + bias_ref[h]

            # softmax (f32 math; reciprocal on the EUP slot)
            m = jnp.max(s, axis=-1, keepdims=True)
            p = jnp.exp(s - m)
            attn = p * pl.reciprocal(jnp.sum(p, axis=-1, keepdims=True),
                                     approx=True)
            attn_ref[r, h] = attn.astype(attn_ref.dtype)

            heads_out.append(jnp.dot(attn, vh,
                                     preferred_element_type=jnp.float32))    # (N, Dh)

        # Head-merge (lane concat) for this sub-window, accumulate over ratio.
        o_acc = o_acc + jnp.concatenate(heads_out, axis=-1)                  # (N, C)

    # Single output projection per window (proj is linear -> sum-then-project).
    y = jnp.dot(o_acc, wp_ref[...], preferred_element_type=jnp.float32) + bp_ref[...]
    x_ref[0] = y.astype(x_ref.dtype)


# ---------------------------------------------------------------------------
# Wrapper
# ---------------------------------------------------------------------------
def cross_window_attention(x1, x2, prep, *, num_heads):
    """x1: (B1, N, C), x2: (B2, N, C) with B2 = B1 * ratio.
    Returns (x: (B1, N, C), attn: (B2, H, N, N))."""
    B1, N, C = x1.shape
    B2 = x2.shape[0]
    ratio = B2 // B1
    H = num_heads
    head_dim = C // H

    grid_spec = pltpu.PrefetchScalarGridSpec(
        num_scalar_prefetch=0,
        grid=(B1,),
        in_specs=[
            pl.BlockSpec((B1, N, C), lambda b: (0, 0, 0)),        # x1 (resident)
            pl.BlockSpec((ratio, N, C), lambda b: (b, 0, 0)),     # x2 slab for window b
            pl.BlockSpec((C, C), lambda b: (0, 0)),               # wq_t (pre-scaled)
            pl.BlockSpec((1, C), lambda b: (0, 0)),               # bq   (pre-scaled)
            pl.BlockSpec((C, 2 * C), lambda b: (0, 0)),           # wkv_t
            pl.BlockSpec((1, 2 * C), lambda b: (0, 0)),           # bkv
            pl.BlockSpec((H, N, N), lambda b: (0, 0, 0)),         # rel-pos bias
            pl.BlockSpec((C, C), lambda b: (0, 0)),               # wp_t
            pl.BlockSpec((1, C), lambda b: (0, 0)),               # bp
        ],
        out_specs=[
            pl.BlockSpec((ratio, H, N, N), lambda b: (b, 0, 0, 0)),  # attn
            pl.BlockSpec((1, N, C), lambda b: (b, 0, 0)),            # x (lane-dense)
        ],
    )

    attn, x = pl.pallas_call(
        functools.partial(_fused_kernel, num_heads=H, ratio=ratio,
                          head_dim=head_dim),
        out_shape=(
            jax.ShapeDtypeStruct((B2, H, N, N), jnp.float32),
            jax.ShapeDtypeStruct((B1, N, C), x1.dtype),
        ),
        grid_spec=grid_spec,
        compiler_params=pltpu.CompilerParams(
            dimension_semantics=("parallel",),
        ),
    )(x1, x2, prep["wq_t"], prep["bq"], prep["wkv_t"], prep["bkv"],
      prep["bias"], prep["wp_t"], prep["bp"])
    return x, attn


# ---------------------------------------------------------------------------
# Parameters, relative-position index, one-time parameter preparation
# ---------------------------------------------------------------------------
def make_relative_position_index(Wh, Ww):
    coords_h = jnp.arange(Wh)
    coords_w = jnp.arange(Ww)
    coords = jnp.stack(jnp.meshgrid(coords_h, coords_w, indexing="ij"))   # (2,Wh,Ww)
    coords_flat = coords.reshape(2, -1)                                   # (2, N)
    rel = coords_flat[:, :, None] - coords_flat[:, None, :]               # (2, N, N)
    rel = rel.transpose(1, 2, 0)                                          # (N, N, 2)
    rel = rel.at[:, :, 0].add(Wh - 1)
    rel = rel.at[:, :, 1].add(Ww - 1)
    rel = rel.at[:, :, 0].multiply(2 * Ww - 1)
    return rel.sum(-1)                                                    # (N, N)


def make_params(key, dim, window_size, num_heads):
    Wh, Ww = window_size
    ks = jax.random.split(key, 7)
    std = 0.02
    tn = lambda k, shape: std * jax.random.truncated_normal(k, -2.0, 2.0, shape,
                                                            jnp.float32)
    # NOTE: the PyTorch module zero-initializes proj.* and the qkv biases; we
    # use small random values here so the fused bias/proj paths are actually
    # exercised by the numerical check (forward semantics are identical).
    return {
        "rpb_table": tn(ks[0], ((2 * Wh - 1) * (2 * Ww - 1), num_heads)),
        "w_qkv1": tn(ks[1], (dim, dim)),
        "b_qkv1": tn(ks[2], (dim,)),
        "w_qkv2": tn(ks[3], (2 * dim, dim)),
        "b_qkv2": tn(ks[4], (2 * dim,)),
        "w_proj": tn(ks[5], (dim, dim)),
        "b_proj": tn(ks[6], (dim,)),
    }


def prepare_params(params, window_size, num_heads):
    """One-time prep (outside the per-call path): transpose Linear weights,
    fold the qk scale into qkv1, and gather/permute the rel-pos bias."""
    Wh, Ww = window_size
    N = Wh * Ww
    C = params["w_qkv1"].shape[1]
    head_dim = C // num_heads
    scale = head_dim ** (-0.5)

    idx = make_relative_position_index(Wh, Ww)
    bias = params["rpb_table"][idx.reshape(-1)].reshape(N, N, num_heads)
    bias = bias.transpose(2, 0, 1).astype(jnp.float32)                    # (H, N, N)

    return {
        "wq_t": (params["w_qkv1"].T * scale).astype(jnp.float32),
        "bq": (params["b_qkv1"] * scale).reshape(1, C).astype(jnp.float32),
        "wkv_t": params["w_qkv2"].T.astype(jnp.float32),
        "bkv": params["b_qkv2"].reshape(1, 2 * C).astype(jnp.float32),
        "wp_t": params["w_proj"].T.astype(jnp.float32),
        "bp": params["b_proj"].reshape(1, C).astype(jnp.float32),
        "bias": bias,
    }


# ---------------------------------------------------------------------------
# Pure-JAX reference (mirrors the PyTorch forward exactly)
# ---------------------------------------------------------------------------
def reference(x1, x2, params, window_size, num_heads):
    B1, N1, C = x1.shape
    B2, N2, _ = x2.shape
    ratio = B2 // B1
    H = num_heads
    Dh = C // H
    scale = Dh ** (-0.5)

    q = (x1 @ params["w_qkv1"].T + params["b_qkv1"]).reshape(B1, N1, H, Dh).transpose(0, 2, 1, 3)
    kv = (x2 @ params["w_qkv2"].T + params["b_qkv2"]).reshape(B2, N2, 2, H, Dh).transpose(2, 0, 3, 1, 4)
    k, v = kv[0], kv[1]

    q = q * scale
    q = jnp.tile(q, (ratio, 1, 1, 1))                                     # torch .repeat
    attn = q @ jnp.swapaxes(k, -2, -1)

    idx = make_relative_position_index(*window_size)
    bias = params["rpb_table"][idx.reshape(-1)].reshape(N1, N2, H).transpose(2, 0, 1)
    attn = attn + bias[None]
    attn = jax.nn.softmax(attn, axis=-1)

    out = attn @ v
    if B1 == B2:
        x = out.transpose(0, 2, 1, 3).reshape(B1, N1, C)
    else:
        x = out.reshape(B1, ratio, H, N1, Dh).transpose(0, 1, 3, 2, 4).reshape(B1, ratio, N1, C)
        x = x.sum(axis=1)
    x = x @ params["w_proj"].T + params["b_proj"]
    return x, attn


# ---------------------------------------------------------------------------
if __name__ == "__main__":
    dim = 32
    window_size = (4, 4)          # N = 16 tokens per window
    num_heads = 4                 # head_dim = 8
    B1, ratio = 2, 2
    B2 = B1 * ratio
    N = window_size[0] * window_size[1]

    key = jax.random.PRNGKey(0)
    kx1, kx2, kp = jax.random.split(key, 3)
    x1 = jax.random.normal(kx1, (B1, N, dim), jnp.float32)
    x2 = jax.random.normal(kx2, (B2, N, dim), jnp.float32)
    params = make_params(kp, dim, window_size, num_heads)
    prep = prepare_params(params, window_size, num_heads)

    fwd = jax.jit(functools.partial(cross_window_attention, num_heads=num_heads))
    x_out, attn_out = fwd(x1, x2, prep)
    jax.block_until_ready((x_out, attn_out))

    x_expected, attn_expected = reference(x1, x2, params, window_size, num_heads)
    np.testing.assert_allclose(np.asarray(attn_out), np.asarray(attn_expected),
                               rtol=1e-2, atol=2e-3)
    np.testing.assert_allclose(np.asarray(x_out), np.asarray(x_expected),
                               rtol=1e-2, atol=1e-3)
    assert x_out.shape == (B1, N, dim) and attn_out.shape == (B2, num_heads, N, N)

    print("KERNEL_OK")
</pallas_src>

<mosaic_0001>
module attributes {stable_mosaic.version = 11 : i64} {
  func.func @_fused_kernel(%arg0: i32, %arg1: memref<2x16x32xf32, #tpu.memory_space<vmem>>, %arg2: memref<2x16x32xf32, #tpu.memory_space<vmem>>, %arg3: memref<32x32xf32, #tpu.memory_space<vmem>>, %arg4: memref<1x32xf32, #tpu.memory_space<vmem>>, %arg5: memref<32x64xf32, #tpu.memory_space<vmem>>, %arg6: memref<1x64xf32, #tpu.memory_space<vmem>>, %arg7: memref<4x16x16xf32, #tpu.memory_space<vmem>>, %arg8: memref<32x32xf32, #tpu.memory_space<vmem>>, %arg9: memref<1x32xf32, #tpu.memory_space<vmem>>, %arg10: memref<2x4x16x16xf32, #tpu.memory_space<vmem>>, %arg11: memref<1x16x32xf32, #tpu.memory_space<vmem>>) attributes {dimension_semantics = [#tpu.dimension_semantics<parallel>], iteration_bounds = array<i64: 2>, scalar_prefetch = 0 : i64, scratch_operands = 0 : i64, tpu.core_type = #tpu.core_type<tc>, window_params = [{pipeline_mode = #tpu.pipeline_mode<synchronous>, transform_indices = @transform_0, window_bounds = array<i64: 2, 16, 32>}, {transform_indices = @transform_1, window_bounds = array<i64: 2, 16, 32>}, {pipeline_mode = #tpu.pipeline_mode<synchronous>, transform_indices = @transform_2, window_bounds = array<i64: 32, 32>}, {pipeline_mode = #tpu.pipeline_mode<synchronous>, transform_indices = @transform_3, window_bounds = array<i64: 1, 32>}, {pipeline_mode = #tpu.pipeline_mode<synchronous>, transform_indices = @transform_4, window_bounds = array<i64: 32, 64>}, {pipeline_mode = #tpu.pipeline_mode<synchronous>, transform_indices = @transform_5, window_bounds = array<i64: 1, 64>}, {pipeline_mode = #tpu.pipeline_mode<synchronous>, transform_indices = @transform_6, window_bounds = array<i64: 4, 16, 16>}, {pipeline_mode = #tpu.pipeline_mode<synchronous>, transform_indices = @transform_7, window_bounds = array<i64: 32, 32>}, {pipeline_mode = #tpu.pipeline_mode<synchronous>, transform_indices = @transform_8, window_bounds = array<i64: 1, 32>}, {transform_indices = @transform_9, window_bounds = array<i64: 2, 4, 16, 16>}, {transform_indices = @transform_10, window_bounds = array<i64: 1, 16, 32>}]} {
    %cst = arith.constant 0.000000e+00 : f32
    %0 = vector.broadcast %cst : f32 to vector<16x32xf32>
    %c2_i32 = arith.constant 2 : i32
    %1 = arith.muli %arg0, %c2_i32 : i32
    %c0_i32 = arith.constant 0 : i32
    %2 = arith.addi %1, %c0_i32 : i32
    %c2_i32_0 = arith.constant 2 : i32
    %c0_i32_1 = arith.constant 0 : i32
    %3 = arith.cmpi eq, %c2_i32_0, %c0_i32_1 : i32
    %c1_i32 = arith.constant 1 : i32
    %4 = arith.select %3, %c1_i32, %c2_i32_0 : i32
    %5 = arith.remsi %2, %4 : i32
    %c0_i32_2 = arith.constant 0 : i32
    %6 = arith.cmpi ne, %5, %c0_i32_2 : i32
    %c0_i32_3 = arith.constant 0 : i32
    %7 = arith.cmpi slt, %5, %c0_i32_3 : i32
    %c0_i32_4 = arith.constant 0 : i32
    %8 = arith.cmpi slt, %4, %c0_i32_4 : i32
    %9 = arith.xori %7, %8 : i1
    %10 = arith.andi %9, %6 : i1
    %11 = arith.addi %5, %4 : i32
    %12 = arith.select %10, %11, %5 : i32
    %13 = arith.index_cast %12 : i32 to index
    %c0 = arith.constant 0 : index
    %c0_5 = arith.constant 0 : index
    %14 = vector.load %arg1[%13, %c0, %c0_5] : memref<2x16x32xf32, #tpu.memory_space<vmem>>, vector<1x16x32xf32>
    %15 = vector.shape_cast %14 : vector<1x16x32xf32> to vector<16x32xf32>
    %c0_6 = arith.constant 0 : index
    %c0_7 = arith.constant 0 : index
    %16 = vector.load %arg3[%c0_6, %c0_7] : memref<32x32xf32, #tpu.memory_space<vmem>>, vector<32x32xf32>
    %cst_8 = arith.constant dense<0.000000e+00> : vector<16x32xf32>
    %17 = tpu.matmul %15, %16, %cst_8 {dimension_numbers = #tpu.dot_dimension_numbers<[1], [0], [0], [1], [0, 0, 1, 1], [], []>} : vector<16x32xf32>, vector<32x32xf32>, vector<16x32xf32> -> vector<16x32xf32>
    %c0_9 = arith.constant 0 : index
    %c0_10 = arith.constant 0 : index
    %18 = vector.load %arg4[%c0_9, %c0_10] : memref<1x32xf32, #tpu.memory_space<vmem>>, vector<1x32xf32>
    %19 = vector.broadcast %18 : vector<1x32xf32> to vector<16x32xf32>
    %20 = arith.addf %17, %19 : vector<16x32xf32>
    %c0_11 = arith.constant 0 : index
    %c0_12 = arith.constant 0 : index
    %c0_13 = arith.constant 0 : index
    %21 = vector.load %arg2[%c0_11, %c0_12, %c0_13] : memref<2x16x32xf32, #tpu.memory_space<vmem>>, vector<1x16x32xf32>
    %22 = vector.shape_cast %21 : vector<1x16x32xf32> to vector<16x32xf32>
    %c0_14 = arith.constant 0 : index
    %c0_15 = arith.constant 0 : index
    %23 = vector.load %arg5[%c0_14, %c0_15] : memref<32x64xf32, #tpu.memory_space<vmem>>, vector<32x64xf32>
    %cst_16 = arith.constant dense<0.000000e+00> : vector<16x64xf32>
    %24 = tpu.matmul %22, %23, %cst_16 {dimension_numbers = #tpu.dot_dimension_numbers<[1], [0], [0], [1], [0, 0, 1, 1], [], []>} : vector<16x32xf32>, vector<32x64xf32>, vector<16x64xf32> -> vector<16x64xf32>
    %c0_17 = arith.constant 0 : index
    %c0_18 = arith.constant 0 : index
    %25 = vector.load %arg6[%c0_17, %c0_18] : memref<1x64xf32, #tpu.memory_space<vmem>>, vector<1x64xf32>
    %26 = vector.broadcast %25 : vector<1x64xf32> to vector<16x64xf32>
    %27 = arith.addf %24, %26 : vector<16x64xf32>
    %28 = vector.extract_strided_slice %20 {offsets = [0, 0], sizes = [16, 8], strides = [1, 1]} : vector<16x32xf32> to vector<16x8xf32>
    %29 = vector.extract_strided_slice %27 {offsets = [0, 0], sizes = [16, 8], strides = [1, 1]} : vector<16x64xf32> to vector<16x8xf32>
    %30 = vector.extract_strided_slice %27 {offsets = [0, 32], sizes = [16, 8], strides = [1, 1]} : vector<16x64xf32> to vector<16x8xf32>
    %cst_19 = arith.constant dense<0.000000e+00> : vector<16x16xf32>
    %31 = tpu.matmul %28, %29, %cst_19 {dimension_numbers = #tpu.dot_dimension_numbers<[1], [1], [0], [0], [0, 0, 1, 0], [], []>} : vector<16x8xf32>, vector<16x8xf32>, vector<16x16xf32> -> vector<16x16xf32>
    %c0_20 = arith.constant 0 : index
    %c0_21 = arith.constant 0 : index
    %c0_22 = arith.constant 0 : index
    %32 = vector.load %arg7[%c0_20, %c0_21, %c0_22] : memref<4x16x16xf32, #tpu.memory_space<vmem>>, vector<1x16x16xf32>
    %33 = vector.shape_cast %32 : vector<1x16x16xf32> to vector<16x16xf32>
    %34 = arith.addf %31, %33 : vector<16x16xf32>
    %cst_23 = arith.constant dense<0xFF800000> : vector<16xf32>
    %35 = vector.multi_reduction <maximumf>, %34, %cst_23 [1] : vector<16x16xf32> to vector<16xf32>
    %36 = vector.shape_cast %35 : vector<16xf32> to vector<16x1xf32>
    %37 = vector.broadcast %36 : vector<16x1xf32> to vector<16x16xf32>
    %38 = arith.subf %34, %37 : vector<16x16xf32>
    %39 = math.exp %38 : vector<16x16xf32>
    %cst_24 = arith.constant dense<0.000000e+00> : vector<16xf32>
    %40 = vector.multi_reduction <add>, %39, %cst_24 [1] : vector<16x16xf32> to vector<16xf32>
    %41 = vector.shape_cast %40 : vector<16xf32> to vector<16x1xf32>
    %42 = tpu.reciprocal %41 {approx = true} : vector<16x1xf32> -> vector<16x1xf32>
    %43 = vector.broadcast %42 : vector<16x1xf32> to vector<16x16xf32>
    %44 = arith.mulf %39, %43 : vector<16x16xf32>
    %c0_25 = arith.constant 0 : index
    %c0_26 = arith.constant 0 : index
    %c0_27 = arith.constant 0 : index
    %c0_28 = arith.constant 0 : index
    %45 = vector.load %arg10[%c0_25, %c0_26, %c0_27, %c0_28] : memref<2x4x16x16xf32, #tpu.memory_space<vmem>>, vector<1x1x16x16xf32>
    %46 = vector.shape_cast %45 : vector<1x1x16x16xf32> to vector<16x16xf32>
    %47 = vector.shape_cast %44 : vector<16x16xf32> to vector<1x1x16x16xf32>
    tpu.vector_store %arg10[%c0_25, %c0_26, %c0_27, %c0_28], %47 {strides = array<i32>} : memref<2x4x16x16xf32, #tpu.memory_space<vmem>>, vector<1x1x16x16xf32>,
    %cst_29 = arith.constant dense<0.000000e+00> : vector<16x8xf32>
    %48 = tpu.matmul %44, %30, %cst_29 {dimension_numbers = #tpu.dot_dimension_numbers<[1], [0], [0], [1], [0, 0, 1, 1], [], []>} : vector<16x16xf32>, vector<16x8xf32>, vector<16x8xf32> -> vector<16x8xf32>
    %49 = vector.extract_strided_slice %20 {offsets = [0, 8], sizes = [16, 8], strides = [1, 1]} : vector<16x32xf32> to vector<16x8xf32>
    %50 = vector.extract_strided_slice %27 {offsets = [0, 8], sizes = [16, 8], strides = [1, 1]} : vector<16x64xf32> to vector<16x8xf32>
    %51 = vector.extract_strided_slice %27 {offsets = [0, 40], sizes = [16, 8], strides = [1, 1]} : vector<16x64xf32> to vector<16x8xf32>
    %cst_30 = arith.constant dense<0.000000e+00> : vector<16x16xf32>
    %52 = tpu.matmul %49, %50, %cst_30 {dimension_numbers = #tpu.dot_dimension_numbers<[1], [1], [0], [0], [0, 0, 1, 0], [], []>} : vector<16x8xf32>, vector<16x8xf32>, vector<16x16xf32> -> vector<16x16xf32>
    %c1 = arith.constant 1 : index
    %c0_31 = arith.constant 0 : index
    %c0_32 = arith.constant 0 : index
    %53 = vector.load %arg7[%c1, %c0_31, %c0_32] : memref<4x16x16xf32, #tpu.memory_space<vmem>>, vector<1x16x16xf32>
    %54 = vector.shape_cast %53 : vector<1x16x16xf32> to vector<16x16xf32>
    %55 = arith.addf %52, %54 : vector<16x16xf32>
    %cst_33 = arith.constant dense<0xFF800000> : vector<16xf32>
    %56 = vector.multi_reduction <maximumf>, %55, %cst_33 [1] : vector<16x16xf32> to vector<16xf32>
    %57 = vector.shape_cast %56 : vector<16xf32> to vector<16x1xf32>
    %58 = vector.broadcast %57 : vector<16x1xf32> to vector<16x16xf32>
    %59 = arith.subf %55, %58 : vector<16x16xf32>
    %60 = math.exp %59 : vector<16x16xf32>
    %cst_34 = arith.constant dense<0.000000e+00> : vector<16xf32>
    %61 = vector.multi_reduction <add>, %60, %cst_34 [1] : vector<16x16xf32> to vector<16xf32>
    %62 = vector.shape_cast %61 : vector<16xf32> to vector<16x1xf32>
    %63 = tpu.reciprocal %62 {approx = true} : vector<16x1xf32> -> vector<16x1xf32>
    %64 = vector.broadcast %63 : vector<16x1xf32> to vector<16x16xf32>
    %65 = arith.mulf %60, %64 : vector<16x16xf32>
    %c0_35 = arith.constant 0 : index
    %c1_36 = arith.constant 1 : index
    %c0_37 = arith.constant 0 : index
    %c0_38 = arith.constant 0 : index
    %66 = vector.load %arg10[%c0_35, %c1_36, %c0_37, %c0_38] : memref<2x4x16x16xf32, #tpu.memory_space<vmem>>, vector<1x1x16x16xf32>
    %67 = vector.shape_cast %66 : vector<1x1x16x16xf32> to vector<16x16xf32>
    %68 = vector.shape_cast %65 : vector<16x16xf32> to vector<1x1x16x16xf32>
    tpu.vector_store %arg10[%c0_35, %c1_36, %c0_37, %c0_38], %68 {strides = array<i32>} : memref<2x4x16x16xf32, #tpu.memory_space<vmem>>, vector<1x1x16x16xf32>,
    %cst_39 = arith.constant dense<0.000000e+00> : vector<16x8xf32>
    %69 = tpu.matmul %65, %51, %cst_39 {dimension_numbers = #tpu.dot_dimension_numbers<[1], [0], [0], [1], [0, 0, 1, 1], [], []>} : vector<16x16xf32>, vector<16x8xf32>, vector<16x8xf32> -> vector<16x8xf32>
    %70 = vector.extract_strided_slice %20 {offsets = [0, 16], sizes = [16, 8], strides = [1, 1]} : vector<16x32xf32> to vector<16x8xf32>
    %71 = vector.extract_strided_slice %27 {offsets = [0, 16], sizes = [16, 8], strides = [1, 1]} : vector<16x64xf32> to vector<16x8xf32>
    %72 = vector.extract_strided_slice %27 {offsets = [0, 48], sizes = [16, 8], strides = [1, 1]} : vector<16x64xf32> to vector<16x8xf32>
    %cst_40 = arith.constant dense<0.000000e+00> : vector<16x16xf32>
    %73 = tpu.matmul %70, %71, %cst_40 {dimension_numbers = #tpu.dot_dimension_numbers<[1], [1], [0], [0], [0, 0, 1, 0], [], []>} : vector<16x8xf32>, vector<16x8xf32>, vector<16x16xf32> -> vector<16x16xf32>
    %c2 = arith.constant 2 : index
    %c0_41 = arith.constant 0 : index
    %c0_42 = arith.constant 0 : index
    %74 = vector.load %arg7[%c2, %c0_41, %c0_42] : memref<4x16x16xf32, #tpu.memory_space<vmem>>, vector<1x16x16xf32>
    %75 = vector.shape_cast %74 : vector<1x16x16xf32> to vector<16x16xf32>
    %76 = arith.addf %73, %75 : vector<16x16xf32>
    %cst_43 = arith.constant dense<0xFF800000> : vector<16xf32>
    %77 = vector.multi_reduction <maximumf>, %76, %cst_43 [1] : vector<16x16xf32> to vector<16xf32>
    %78 = vector.shape_cast %77 : vector<16xf32> to vector<16x1xf32>
    %79 = vector.broadcast %78 : vector<16x1xf32> to vector<16x16xf32>
    %80 = arith.subf %76, %79 : vector<16x16xf32>
    %81 = math.exp %80 : vector<16x16xf32>
    %cst_44 = arith.constant dense<0.000000e+00> : vector<16xf32>
    %82 = vector.multi_reduction <add>, %81, %cst_44 [1] : vector<16x16xf32> to vector<16xf32>
    %83 = vector.shape_cast %82 : vector<16xf32> to vector<16x1xf32>
    %84 = tpu.reciprocal %83 {approx = true} : vector<16x1xf32> -> vector<16x1xf32>
    %85 = vector.broadcast %84 : vector<16x1xf32> to vector<16x16xf32>
    %86 = arith.mulf %81, %85 : vector<16x16xf32>
    %c0_45 = arith.constant 0 : index
    %c2_46 = arith.constant 2 : index
    %c0_47 = arith.constant 0 : index
    %c0_48 = arith.constant 0 : index
    %87 = vector.load %arg10[%c0_45, %c2_46, %c0_47, %c0_48] : memref<2x4x16x16xf32, #tpu.memory_space<vmem>>, vector<1x1x16x16xf32>
    %88 = vector.shape_cast %87 : vector<1x1x16x16xf32> to vector<16x16xf32>
    %89 = vector.shape_cast %86 : vector<16x16xf32> to vector<1x1x16x16xf32>
    tpu.vector_store %arg10[%c0_45, %c2_46, %c0_47, %c0_48], %89 {strides = array<i32>} : memref<2x4x16x16xf32, #tpu.memory_space<vmem>>, vector<1x1x16x16xf32>,
    %cst_49 = arith.constant dense<0.000000e+00> : vector<16x8xf32>
    %90 = tpu.matmul %86, %72, %cst_49 {dimension_numbers = #tpu.dot_dimension_numbers<[1], [0], [0], [1], [0, 0, 1, 1], [], []>} : vector<16x16xf32>, vector<16x8xf32>, vector<16x8xf32> -> vector<16x8xf32>
    %91 = vector.extract_strided_slice %20 {offsets = [0, 24], sizes = [16, 8], strides = [1, 1]} : vector<16x32xf32> to vector<16x8xf32>
    %92 = vector.extract_strided_slice %27 {offsets = [0, 24], sizes = [16, 8], strides = [1, 1]} : vector<16x64xf32> to vector<16x8xf32>
    %93 = vector.extract_strided_slice %27 {offsets = [0, 56], sizes = [16, 8], strides = [1, 1]} : vector<16x64xf32> to vector<16x8xf32>
    %cst_50 = arith.constant dense<0.000000e+00> : vector<16x16xf32>
    %94 = tpu.matmul %91, %92, %cst_50 {dimension_numbers = #tpu.dot_dimension_numbers<[1], [1], [0], [0], [0, 0, 1, 0], [], []>} : vector<16x8xf32>, vector<16x8xf32>, vector<16x16xf32> -> vector<16x16xf32>
    %c3 = arith.constant 3 : index
    %c0_51 = arith.constant 0 : index
    %c0_52 = arith.constant 0 : index
    %95 = vector.load %arg7[%c3, %c0_51, %c0_52] : memref<4x16x16xf32, #tpu.memory_space<vmem>>, vector<1x16x16xf32>
    %96 = vector.shape_cast %95 : vector<1x16x16xf32> to vector<16x16xf32>
    %97 = arith.addf %94, %96 : vector<16x16xf32>
    %cst_53 = arith.constant dense<0xFF800000> : vector<16xf32>
    %98 = vector.multi_reduction <maximumf>, %97, %cst_53 [1] : vector<16x16xf32> to vector<16xf32>
    %99 = vector.shape_cast %98 : vector<16xf32> to vector<16x1xf32>
    %100 = vector.broadcast %99 : vector<16x1xf32> to vector<16x16xf32>
    %101 = arith.subf %97, %100 : vector<16x16xf32>
    %102 = math.exp %101 : vector<16x16xf32>
    %cst_54 = arith.constant dense<0.000000e+00> : vector<16xf32>
    %103 = vector.multi_reduction <add>, %102, %cst_54 [1] : vector<16x16xf32> to vector<16xf32>
    %104 = vector.shape_cast %103 : vector<16xf32> to vector<16x1xf32>
    %105 = tpu.reciprocal %104 {approx = true} : vector<16x1xf32> -> vector<16x1xf32>
    %106 = vector.broadcast %105 : vector<16x1xf32> to vector<16x16xf32>
    %107 = arith.mulf %102, %106 : vector<16x16xf32>
    %c0_55 = arith.constant 0 : index
    %c3_56 = arith.constant 3 : index
    %c0_57 = arith.constant 0 : index
    %c0_58 = arith.constant 0 : index
    %108 = vector.load %arg10[%c0_55, %c3_56, %c0_57, %c0_58] : memref<2x4x16x16xf32, #tpu.memory_space<vmem>>, vector<1x1x16x16xf32>
    %109 = vector.shape_cast %108 : vector<1x1x16x16xf32> to vector<16x16xf32>
    %110 = vector.shape_cast %107 : vector<16x16xf32> to vector<1x1x16x16xf32>
    tpu.vector_store %arg10[%c0_55, %c3_56, %c0_57, %c0_58], %110 {strides = array<i32>} : memref<2x4x16x16xf32, #tpu.memory_space<vmem>>, vector<1x1x16x16xf32>,
    %cst_59 = arith.constant dense<0.000000e+00> : vector<16x8xf32>
    %111 = tpu.matmul %107, %93, %cst_59 {dimension_numbers = #tpu.dot_dimension_numbers<[1], [0], [0], [1], [0, 0, 1, 1], [], []>} : vector<16x16xf32>, vector<16x8xf32>, vector<16x8xf32> -> vector<16x8xf32>
    %112 = tpu.concatenate %48, %69, %90, %111 in 1 : vector<16x8xf32>, vector<16x8xf32>, vector<16x8xf32>, vector<16x8xf32> -> vector<16x32xf32>
    %113 = arith.addf %0, %112 : vector<16x32xf32>
    %c2_i32_60 = arith.constant 2 : i32
    %114 = arith.muli %arg0, %c2_i32_60 : i32
    %c1_i32_61 = arith.constant 1 : i32
    %115 = arith.addi %114, %c1_i32_61 : i32
    %c2_i32_62 = arith.constant 2 : i32
    %c0_i32_63 = arith.constant 0 : i32
    %116 = arith.cmpi eq, %c2_i32_62, %c0_i32_63 : i32
    %c1_i32_64 = arith.constant 1 : i32
    %117 = arith.select %116, %c1_i32_64, %c2_i32_62 : i32
    %118 = arith.remsi %115, %117 : i32
    %c0_i32_65 = arith.constant 0 : i32
    %119 = arith.cmpi ne, %118, %c0_i32_65 : i32
    %c0_i32_66 = arith.constant 0 : i32
    %120 = arith.cmpi slt, %118, %c0_i32_66 : i32
    %c0_i32_67 = arith.constant 0 : i32
    %121 = arith.cmpi slt, %117, %c0_i32_67 : i32
    %122 = arith.xori %120, %121 : i1
    %123 = arith.andi %122, %119 : i1
    %124 = arith.addi %118, %117 : i32
    %125 = arith.select %123, %124, %118 : i32
    %126 = arith.index_cast %125 : i32 to index
    %c0_68 = arith.constant 0 : index
    %c0_69 = arith.constant 0 : index
    %127 = vector.load %arg1[%126, %c0_68, %c0_69] : memref<2x16x32xf32, #tpu.memory_space<vmem>>, vector<1x16x32xf32>
    %128 = vector.shape_cast %127 : vector<1x16x32xf32> to vector<16x32xf32>
    %c0_70 = arith.constant 0 : index
    %c0_71 = arith.constant 0 : index
    %129 = vector.load %arg3[%c0_70, %c0_71] : memref<32x32xf32, #tpu.memory_space<vmem>>, vector<32x32xf32>
    %cst_72 = arith.constant dense<0.000000e+00> : vector<16x32xf32>
    %130 = tpu.matmul %128, %129, %cst_72 {dimension_numbers = #tpu.dot_dimension_numbers<[1], [0], [0], [1], [0, 0, 1, 1], [], []>} : vector<16x32xf32>, vector<32x32xf32>, vector<16x32xf32> -> vector<16x32xf32>
    %c0_73 = arith.constant 0 : index
    %c0_74 = arith.constant 0 : index
    %131 = vector.load %arg4[%c0_73, %c0_74] : memref<1x32xf32, #tpu.memory_space<vmem>>, vector<1x32xf32>
    %132 = vector.broadcast %131 : vector<1x32xf32> to vector<16x32xf32>
    %133 = arith.addf %130, %132 : vector<16x32xf32>
    %c1_75 = arith.constant 1 : index
    %c0_76 = arith.constant 0 : index
    %c0_77 = arith.constant 0 : index
    %134 = vector.load %arg2[%c1_75, %c0_76, %c0_77] : memref<2x16x32xf32, #tpu.memory_space<vmem>>, vector<1x16x32xf32>
    %135 = vector.shape_cast %134 : vector<1x16x32xf32> to vector<16x32xf32>
    %c0_78 = arith.constant 0 : index
    %c0_79 = arith.constant 0 : index
    %136 = vector.load %arg5[%c0_78, %c0_79] : memref<32x64xf32, #tpu.memory_space<vmem>>, vector<32x64xf32>
    %cst_80 = arith.constant dense<0.000000e+00> : vector<16x64xf32>
    %137 = tpu.matmul %135, %136, %cst_80 {dimension_numbers = #tpu.dot_dimension_numbers<[1], [0], [0], [1], [0, 0, 1, 1], [], []>} : vector<16x32xf32>, vector<32x64xf32>, vector<16x64xf32> -> vector<16x64xf32>
    %c0_81 = arith.constant 0 : index
    %c0_82 = arith.constant 0 : index
    %138 = vector.load %arg6[%c0_81, %c0_82] : memref<1x64xf32, #tpu.memory_space<vmem>>, vector<1x64xf32>
    %139 = vector.broadcast %138 : vector<1x64xf32> to vector<16x64xf32>
    %140 = arith.addf %137, %139 : vector<16x64xf32>
    %141 = vector.extract_strided_slice %133 {offsets = [0, 0], sizes = [16, 8], strides = [1, 1]} : vector<16x32xf32> to vector<16x8xf32>
    %142 = vector.extract_strided_slice %140 {offsets = [0, 0], sizes = [16, 8], strides = [1, 1]} : vector<16x64xf32> to vector<16x8xf32>
    %143 = vector.extract_strided_slice %140 {offsets = [0, 32], sizes = [16, 8], strides = [1, 1]} : vector<16x64xf32> to vector<16x8xf32>
    %cst_83 = arith.constant dense<0.000000e+00> : vector<16x16xf32>
    %144 = tpu.matmul %141, %142, %cst_83 {dimension_numbers = #tpu.dot_dimension_numbers<[1], [1], [0], [0], [0, 0, 1, 0], [], []>} : vector<16x8xf32>, vector<16x8xf32>, vector<16x16xf32> -> vector<16x16xf32>
    %c0_84 = arith.constant 0 : index
    %c0_85 = arith.constant 0 : index
    %c0_86 = arith.constant 0 : index
    %145 = vector.load %arg7[%c0_84, %c0_85, %c0_86] : memref<4x16x16xf32, #tpu.memory_space<vmem>>, vector<1x16x16xf32>
    %146 = vector.shape_cast %145 : vector<1x16x16xf32> to vector<16x16xf32>
    %147 = arith.addf %144, %146 : vector<16x16xf32>
    %cst_87 = arith.constant dense<0xFF800000> : vector<16xf32>
    %148 = vector.multi_reduction <maximumf>, %147, %cst_87 [1] : vector<16x16xf32> to vector<16xf32>
    %149 = vector.shape_cast %148 : vector<16xf32> to vector<16x1xf32>
    %150 = vector.broadcast %149 : vector<16x1xf32> to vector<16x16xf32>
    %151 = arith.subf %147, %150 : vector<16x16xf32>
    %152 = math.exp %151 : vector<16x16xf32>
    %cst_88 = arith.constant dense<0.000000e+00> : vector<16xf32>
    %153 = vector.multi_reduction <add>, %152, %cst_88 [1] : vector<16x16xf32> to vector<16xf32>
    %154 = vector.shape_cast %153 : vector<16xf32> to vector<16x1xf32>
    %155 = tpu.reciprocal %154 {approx = true} : vector<16x1xf32> -> vector<16x1xf32>
    %156 = vector.broadcast %155 : vector<16x1xf32> to vector<16x16xf32>
    %157 = arith.mulf %152, %156 : vector<16x16xf32>
    %c1_89 = arith.constant 1 : index
    %c0_90 = arith.constant 0 : index
    %c0_91 = arith.constant 0 : index
    %c0_92 = arith.constant 0 : index
    %158 = vector.load %arg10[%c1_89, %c0_90, %c0_91, %c0_92] : memref<2x4x16x16xf32, #tpu.memory_space<vmem>>, vector<1x1x16x16xf32>
    %159 = vector.shape_cast %158 : vector<1x1x16x16xf32> to vector<16x16xf32>
    %160 = vector.shape_cast %157 : vector<16x16xf32> to vector<1x1x16x16xf32>
    tpu.vector_store %arg10[%c1_89, %c0_90, %c0_91, %c0_92], %160 {strides = array<i32>} : memref<2x4x16x16xf32, #tpu.memory_space<vmem>>, vector<1x1x16x16xf32>,
    %cst_93 = arith.constant dense<0.000000e+00> : vector<16x8xf32>
    %161 = tpu.matmul %157, %143, %cst_93 {dimension_numbers = #tpu.dot_dimension_numbers<[1], [0], [0], [1], [0, 0, 1, 1], [], []>} : vector<16x16xf32>, vector<16x8xf32>, vector<16x8xf32> -> vector<16x8xf32>
    %162 = vector.extract_strided_slice %133 {offsets = [0, 8], sizes = [16, 8], strides = [1, 1]} : vector<16x32xf32> to vector<16x8xf32>
    %163 = vector.extract_strided_slice %140 {offsets = [0, 8], sizes = [16, 8], strides = [1, 1]} : vector<16x64xf32> to vector<16x8xf32>
    %164 = vector.extract_strided_slice %140 {offsets = [0, 40], sizes = [16, 8], strides = [1, 1]} : vector<16x64xf32> to vector<16x8xf32>
    %cst_94 = arith.constant dense<0.000000e+00> : vector<16x16xf32>
    %165 = tpu.matmul %162, %163, %cst_94 {dimension_numbers = #tpu.dot_dimension_numbers<[1], [1], [0], [0], [0, 0, 1, 0], [], []>} : vector<16x8xf32>, vector<16x8xf32>, vector<16x16xf32> -> vector<16x16xf32>
    %c1_95 = arith.constant 1 : index
    %c0_96 = arith.constant 0 : index
    %c0_97 = arith.constant 0 : index
    %166 = vector.load %arg7[%c1_95, %c0_96, %c0_97] : memref<4x16x16xf32, #tpu.memory_space<vmem>>, vector<1x16x16xf32>
    %167 = vector.shape_cast %166 : vector<1x16x16xf32> to vector<16x16xf32>
    %168 = arith.addf %165, %167 : vector<16x16xf32>
    %cst_98 = arith.constant dense<0xFF800000> : vector<16xf32>
    %169 = vector.multi_reduction <maximumf>, %168, %cst_98 [1] : vector<16x16xf32> to vector<16xf32>
    %170 = vector.shape_cast %169 : vector<16xf32> to vector<16x1xf32>
    %171 = vector.broadcast %170 : vector<16x1xf32> to vector<16x16xf32>
    %172 = arith.subf %168, %171 : vector<16x16xf32>
    %173 = math.exp %172 : vector<16x16xf32>
    %cst_99 = arith.constant dense<0.000000e+00> : vector<16xf32>
    %174 = vector.multi_reduction <add>, %173, %cst_99 [1] : vector<16x16xf32> to vector<16xf32>
    %175 = vector.shape_cast %174 : vector<16xf32> to vector<16x1xf32>
    %176 = tpu.reciprocal %175 {approx = true} : vector<16x1xf32> -> vector<16x1xf32>
    %177 = vector.broadcast %176 : vector<16x1xf32> to vector<16x16xf32>
    %178 = arith.mulf %173, %177 : vector<16x16xf32>
    %c1_100 = arith.constant 1 : index
    %c1_101 = arith.constant 1 : index
    %c0_102 = arith.constant 0 : index
    %c0_103 = arith.constant 0 : index
    %179 = vector.load %arg10[%c1_100, %c1_101, %c0_102, %c0_103] : memref<2x4x16x16xf32, #tpu.memory_space<vmem>>, vector<1x1x16x16xf32>
    %180 = vector.shape_cast %179 : vector<1x1x16x16xf32> to vector<16x16xf32>
    %181 = vector.shape_cast %178 : vector<16x16xf32> to vector<1x1x16x16xf32>
    tpu.vector_store %arg10[%c1_100, %c1_101, %c0_102, %c0_103], %181 {strides = array<i32>} : memref<2x4x16x16xf32, #tpu.memory_space<vmem>>, vector<1x1x16x16xf32>,
    %cst_104 = arith.constant dense<0.000000e+00> : vector<16x8xf32>
    %182 = tpu.matmul %178, %164, %cst_104 {dimension_numbers = #tpu.dot_dimension_numbers<[1], [0], [0], [1], [0, 0, 1, 1], [], []>} : vector<16x16xf32>, vector<16x8xf32>, vector<16x8xf32> -> vector<16x8xf32>
    %183 = vector.extract_strided_slice %133 {offsets = [0, 16], sizes = [16, 8], strides = [1, 1]} : vector<16x32xf32> to vector<16x8xf32>
    %184 = vector.extract_strided_slice %140 {offsets = [0, 16], sizes = [16, 8], strides = [1, 1]} : vector<16x64xf32> to vector<16x8xf32>
    %185 = vector.extract_strided_slice %140 {offsets = [0, 48], sizes = [16, 8], strides = [1, 1]} : vector<16x64xf32> to vector<16x8xf32>
    %cst_105 = arith.constant dense<0.000000e+00> : vector<16x16xf32>
    %186 = tpu.matmul %183, %184, %cst_105 {dimension_numbers = #tpu.dot_dimension_numbers<[1], [1], [0], [0], [0, 0, 1, 0], [], []>} : vector<16x8xf32>, vector<16x8xf32>, vector<16x16xf32> -> vector<16x16xf32>
    %c2_106 = arith.constant 2 : index
    %c0_107 = arith.constant 0 : index
    %c0_108 = arith.constant 0 : index
    %187 = vector.load %arg7[%c2_106, %c0_107, %c0_108] : memref<4x16x16xf32, #tpu.memory_space<vmem>>, vector<1x16x16xf32>
    %188 = vector.shape_cast %187 : vector<1x16x16xf32> to vector<16x16xf32>
    %189 = arith.addf %186, %188 : vector<16x16xf32>
    %cst_109 = arith.constant dense<0xFF800000> : vector<16xf32>
    %190 = vector.multi_reduction <maximumf>, %189, %cst_109 [1] : vector<16x16xf32> to vector<16xf32>
    %191 = vector.shape_cast %190 : vector<16xf32> to vector<16x1xf32>
    %192 = vector.broadcast %191 : vector<16x1xf32> to vector<16x16xf32>
    %193 = arith.subf %189, %192 : vector<16x16xf32>
    %194 = math.exp %193 : vector<16x16xf32>
    %cst_110 = arith.constant dense<0.000000e+00> : vector<16xf32>
    %195 = vector.multi_reduction <add>, %194, %cst_110 [1] : vector<16x16xf32> to vector<16xf32>
    %196 = vector.shape_cast %195 : vector<16xf32> to vector<16x1xf32>
    %197 = tpu.reciprocal %196 {approx = true} : vector<16x1xf32> -> vector<16x1xf32>
    %198 = vector.broadcast %197 : vector<16x1xf32> to vector<16x16xf32>
    %199 = arith.mulf %194, %198 : vector<16x16xf32>
    %c1_111 = arith.constant 1 : index
    %c2_112 = arith.constant 2 : index
    %c0_113 = arith.constant 0 : index
    %c0_114 = arith.constant 0 : index
    %200 = vector.load %arg10[%c1_111, %c2_112, %c0_113, %c0_114] : memref<2x4x16x16xf32, #tpu.memory_space<vmem>>, vector<1x1x16x16xf32>
    %201 = vector.shape_cast %200 : vector<1x1x16x16xf32> to vector<16x16xf32>
    %202 = vector.shape_cast %199 : vector<16x16xf32> to vector<1x1x16x16xf32>
    tpu.vector_store %arg10[%c1_111, %c2_112, %c0_113, %c0_114], %202 {strides = array<i32>} : memref<2x4x16x16xf32, #tpu.memory_space<vmem>>, vector<1x1x16x16xf32>,
    %cst_115 = arith.constant dense<0.000000e+00> : vector<16x8xf32>
    %203 = tpu.matmul %199, %185, %cst_115 {dimension_numbers = #tpu.dot_dimension_numbers<[1], [0], [0], [1], [0, 0, 1, 1], [], []>} : vector<16x16xf32>, vector<16x8xf32>, vector<16x8xf32> -> vector<16x8xf32>
    %204 = vector.extract_strided_slice %133 {offsets = [0, 24], sizes = [16, 8], strides = [1, 1]} : vector<16x32xf32> to vector<16x8xf32>
    %205 = vector.extract_strided_slice %140 {offsets = [0, 24], sizes = [16, 8], strides = [1, 1]} : vector<16x64xf32> to vector<16x8xf32>
    %206 = vector.extract_strided_slice %140 {offsets = [0, 56], sizes = [16, 8], strides = [1, 1]} : vector<16x64xf32> to vector<16x8xf32>
    %cst_116 = arith.constant dense<0.000000e+00> : vector<16x16xf32>
    %207 = tpu.matmul %204, %205, %cst_116 {dimension_numbers = #tpu.dot_dimension_numbers<[1], [1], [0], [0], [0, 0, 1, 0], [], []>} : vector<16x8xf32>, vector<16x8xf32>, vector<16x16xf32> -> vector<16x16xf32>
    %c3_117 = arith.constant 3 : index
    %c0_118 = arith.constant 0 : index
    %c0_119 = arith.constant 0 : index
    %208 = vector.load %arg7[%c3_117, %c0_118, %c0_119] : memref<4x16x16xf32, #tpu.memory_space<vmem>>, vector<1x16x16xf32>
    %209 = vector.shape_cast %208 : vector<1x16x16xf32> to vector<16x16xf32>
    %210 = arith.addf %207, %209 : vector<16x16xf32>
    %cst_120 = arith.constant dense<0xFF800000> : vector<16xf32>
    %211 = vector.multi_reduction <maximumf>, %210, %cst_120 [1] : vector<16x16xf32> to vector<16xf32>
    %212 = vector.shape_cast %211 : vector<16xf32> to vector<16x1xf32>
    %213 = vector.broadcast %212 : vector<16x1xf32> to vector<16x16xf32>
    %214 = arith.subf %210, %213 : vector<16x16xf32>
    %215 = math.exp %214 : vector<16x16xf32>
    %cst_121 = arith.constant dense<0.000000e+00> : vector<16xf32>
    %216 = vector.multi_reduction <add>, %215, %cst_121 [1] : vector<16x16xf32> to vector<16xf32>
    %217 = vector.shape_cast %216 : vector<16xf32> to vector<16x1xf32>
    %218 = tpu.reciprocal %217 {approx = true} : vector<16x1xf32> -> vector<16x1xf32>
    %219 = vector.broadcast %218 : vector<16x1xf32> to vector<16x16xf32>
    %220 = arith.mulf %215, %219 : vector<16x16xf32>
    %c1_122 = arith.constant 1 : index
    %c3_123 = arith.constant 3 : index
    %c0_124 = arith.constant 0 : index
    %c0_125 = arith.constant 0 : index
    %221 = vector.load %arg10[%c1_122, %c3_123, %c0_124, %c0_125] : memref<2x4x16x16xf32, #tpu.memory_space<vmem>>, vector<1x1x16x16xf32>
    %222 = vector.shape_cast %221 : vector<1x1x16x16xf32> to vector<16x16xf32>
    %223 = vector.shape_cast %220 : vector<16x16xf32> to vector<1x1x16x16xf32>
    tpu.vector_store %arg10[%c1_122, %c3_123, %c0_124, %c0_125], %223 {strides = array<i32>} : memref<2x4x16x16xf32, #tpu.memory_space<vmem>>, vector<1x1x16x16xf32>,
    %cst_126 = arith.constant dense<0.000000e+00> : vector<16x8xf32>
    %224 = tpu.matmul %220, %206, %cst_126 {dimension_numbers = #tpu.dot_dimension_numbers<[1], [0], [0], [1], [0, 0, 1, 1], [], []>} : vector<16x16xf32>, vector<16x8xf32>, vector<16x8xf32> -> vector<16x8xf32>
    %225 = tpu.concatenate %161, %182, %203, %224 in 1 : vector<16x8xf32>, vector<16x8xf32>, vector<16x8xf32>, vector<16x8xf32> -> vector<16x32xf32>
    %226 = arith.addf %113, %225 : vector<16x32xf32>
    %c0_127 = arith.constant 0 : index
    %c0_128 = arith.constant 0 : index
    %227 = vector.load %arg8[%c0_127, %c0_128] : memref<32x32xf32, #tpu.memory_space<vmem>>, vector<32x32xf32>
    %cst_129 = arith.constant dense<0.000000e+00> : vector<16x32xf32>
    %228 = tpu.matmul %226, %227, %cst_129 {dimension_numbers = #tpu.dot_dimension_numbers<[1], [0], [0], [1], [0, 0, 1, 1], [], []>} : vector<16x32xf32>, vector<32x32xf32>, vector<16x32xf32> -> vector<16x32xf32>
    %c0_130 = arith.constant 0 : index
    %c0_131 = arith.constant 0 : index
    %229 = vector.load %arg9[%c0_130, %c0_131] : memref<1x32xf32, #tpu.memory_space<vmem>>, vector<1x32xf32>
    %230 = vector.broadcast %229 : vector<1x32xf32> to vector<16x32xf32>
    %231 = arith.addf %228, %230 : vector<16x32xf32>
    %c0_132 = arith.constant 0 : index
    %c0_133 = arith.constant 0 : index
    %c0_134 = arith.constant 0 : index
    %232 = vector.load %arg11[%c0_132, %c0_133, %c0_134] : memref<1x16x32xf32, #tpu.memory_space<vmem>>, vector<1x16x32xf32>
    %233 = vector.shape_cast %232 : vector<1x16x32xf32> to vector<16x32xf32>
    %234 = vector.shape_cast %231 : vector<16x32xf32> to vector<1x16x32xf32>
    tpu.vector_store %arg11[%c0_132, %c0_133, %c0_134], %234 {strides = array<i32>} : memref<1x16x32xf32, #tpu.memory_space<vmem>>, vector<1x16x32xf32>,
    return
  }
  func.func @transform_0(%arg0: i32) -> (i32, i32, i32) {
    %c0_i32 = arith.constant 0 : i32
    %c0_i32_0 = arith.constant 0 : i32
    %c0_i32_1 = arith.constant 0 : i32
    %c0_i32_2 = arith.constant 0 : i32
    return %c0_i32, %c0_i32_0, %c0_i32_1 : i32, i32, i32
  }
  func.func @transform_1(%arg0: i32) -> (i32, i32, i32) {
    %c0_i32 = arith.constant 0 : i32
    %c0_i32_0 = arith.constant 0 : i32
    %c0_i32_1 = arith.constant 0 : i32
    return %arg0, %c0_i32, %c0_i32_0 : i32, i32, i32
  }
  func.func @transform_2(%arg0: i32) -> (i32, i32) {
    %c0_i32 = arith.constant 0 : i32
    %c0_i32_0 = arith.constant 0 : i32
    %c0_i32_1 = arith.constant 0 : i32
    return %c0_i32, %c0_i32_0 : i32, i32
  }
  func.func @transform_3(%arg0: i32) -> (i32, i32) {
    %c0_i32 = arith.constant 0 : i32
    %c0_i32_0 = arith.constant 0 : i32
    %c0_i32_1 = arith.constant 0 : i32
    return %c0_i32, %c0_i32_0 : i32, i32
  }
  func.func @transform_4(%arg0: i32) -> (i32, i32) {
    %c0_i32 = arith.constant 0 : i32
    %c0_i32_0 = arith.constant 0 : i32
    %c0_i32_1 = arith.constant 0 : i32
    return %c0_i32, %c0_i32_0 : i32, i32
  }
  func.func @transform_5(%arg0: i32) -> (i32, i32) {
    %c0_i32 = arith.constant 0 : i32
    %c0_i32_0 = arith.constant 0 : i32
    %c0_i32_1 = arith.constant 0 : i32
    return %c0_i32, %c0_i32_0 : i32, i32
  }
  func.func @transform_6(%arg0: i32) -> (i32, i32, i32) {
    %c0_i32 = arith.constant 0 : i32
    %c0_i32_0 = arith.constant 0 : i32
    %c0_i32_1 = arith.constant 0 : i32
    %c0_i32_2 = arith.constant 0 : i32
    return %c0_i32, %c0_i32_0, %c0_i32_1 : i32, i32, i32
  }
  func.func @transform_7(%arg0: i32) -> (i32, i32) {
    %c0_i32 = arith.constant 0 : i32
    %c0_i32_0 = arith.constant 0 : i32
    %c0_i32_1 = arith.constant 0 : i32
    return %c0_i32, %c0_i32_0 : i32, i32
  }
  func.func @transform_8(%arg0: i32) -> (i32, i32) {
    %c0_i32 = arith.constant 0 : i32
    %c0_i32_0 = arith.constant 0 : i32
    %c0_i32_1 = arith.constant 0 : i32
    return %c0_i32, %c0_i32_0 : i32, i32
  }
  func.func @transform_9(%arg0: i32) -> (i32, i32, i32, i32) {
    %c0_i32 = arith.constant 0 : i32
    %c0_i32_0 = arith.constant 0 : i32
    %c0_i32_1 = arith.constant 0 : i32
    %c0_i32_2 = arith.constant 0 : i32
    return %arg0, %c0_i32, %c0_i32_0, %c0_i32_1 : i32, i32, i32, i32
  }
  func.func @transform_10(%arg0: i32) -> (i32, i32, i32) {
    %c0_i32 = arith.constant 0 : i32
    %c0_i32_0 = arith.constant 0 : i32
    %c0_i32_1 = arith.constant 0 : i32
    return %arg0, %c0_i32, %c0_i32_0 : i32, i32, i32
  }
}

</mosaic_0001>

<llo_original>
// kernel: cross_window_attention.1
$region0: #{cross_window_attention.1}
  #allocation0 [shape = 'u32[]', space=smem, size = 0x4, offset = 0x4, fixed_abs, tag = 'smem constant byte address 0x4 - core index']
  #allocation1 [shape = 'u32[72,128]{1,0:T(1,128)}', space=vmem, size = 0x9000, scoped, tag = 'internal scratch']
  %s0 = inlined_call_operand.hbm [shape: f32[2,16,32], index: 0, kind: input, shape index: {}]
  %s1 = inlined_call_operand.hbm [shape: f32[4,16,32], index: 1, kind: input, shape index: {}]
  %s2 = inlined_call_operand.hbm [shape: f32[32,32], index: 2, kind: input, shape index: {}]
  %s3 = inlined_call_operand.vmem [shape: f32[1,32], index: 3, kind: input, shape index: {}]
  %s4 = inlined_call_operand.hbm [shape: f32[32,64], index: 4, kind: input, shape index: {}]
  %s5 = inlined_call_operand.vmem [shape: f32[1,64], index: 5, kind: input, shape index: {}]
  %s6 = inlined_call_operand.hbm [shape: f32[4,16,16], index: 6, kind: input, shape index: {}]
  %s7 = inlined_call_operand.hbm [shape: f32[32,32], index: 7, kind: input, shape index: {}]
  %s8 = inlined_call_operand.vmem [shape: f32[1,32], index: 8, kind: input, shape index: {}]
  %s9 = inlined_call_operand.hbm [shape: f32[4,4,16,16], index: 9, kind: output, shape index: {0}]
  %s10 = inlined_call_operand.hbm [shape: f32[2,16,32], index: 10, kind: output, shape index: {1}]
  %11 = xla_tuple %s9, %s10
  %s12 = sld [smem:[#allocation0]]
  $region101: #{cross_window_attention.1} parent=0
    _
  %s14 = ssub.s32 1, %s12
  %s15 = scalar_select 0, %s14, %s12
  $region1: #{cross_window_attention.1} parent=0
    #allocation2 [shape = 'u8[16384]{0}', space=vmem, size = 0x4000, scoped, tag = 'input window, operand 0, single buffered']
    #allocation3 [shape = 's32[2]{0}', space=sflag, size = 0x8, scoped, tag = 'scoped memory for cross_window_attention.1']
    #allocation4 [shape = 's32[2]{0}', space=sflag, size = 0x8, scoped, tag = 'scoped memory for cross_window_attention.1']
    #allocation5 [shape = 'u8[32768]{0}', space=vmem, size = 0x8000, scoped, tag = 'input window, operand 1']
    #allocation6 [shape = 's32[2]{0}', space=sflag, size = 0x8, scoped, tag = 'scoped memory for cross_window_attention.1']
    #allocation7 [shape = 'u8[16384]{0}', space=vmem, size = 0x4000, scoped, tag = 'input window, operand 2, single buffered']
    #allocation8 [shape = 'u8[16384]{0}', space=vmem, size = 0x4000, scoped, tag = 'input window, operand 4, single buffered']
    #allocation9 [shape = 's32[1]{0}', space=sflag, size = 0x4, scoped, tag = 'scoped memory for cross_window_attention.1']
    #allocation10 [shape = 'u8[32768]{0}', space=vmem, size = 0x8000, scoped, tag = 'input window, operand 6, single buffered']
    #allocation11 [shape = 'u8[16384]{0}', space=vmem, size = 0x4000, scoped, tag = 'input window, operand 7, single buffered']
    #allocation12 [shape = 's32[1]{0}', space=sflag, size = 0x4, scoped, tag = 'scoped memory for cross_window_attention.1']
    #allocation13 [shape = 'u8[131072]{0}', space=vmem, size = 0x20000, scoped, tag = 'output window, operand 0']
    #allocation14 [shape = 'u8[16384]{0}', space=vmem, size = 0x4000, scoped, tag = 'output window, operand 1']
    #allocation15 [shape = 's32[2]{0}', space=sflag, size = 0x8, scoped, tag = 'scoped memory for cross_window_attention.1']
    %16 = vsyncpa [#allocation3], 0
    %17 = vsyncpa [#allocation6], 0
    %s18 = scalar_lea.sflag [#allocation6], 1
    %19 = vsyncpa %s18, 0
    %20 = vsyncpa [#allocation9], 0
    %21 = vsyncpa [#allocation12], 0
    %22 = vsyncpa [#allocation4], 0
    %s23 = scalar_lea.sflag [#allocation4], 1
    %24 = vsyncpa %s23, 0
    %25 = vsyncpa [#allocation15], 0
    %s26 = scalar_lea.sflag [#allocation15], 1
    %27 = vsyncpa %s26, 0
    loop: start=0, step=1, limit=4
    $region2: #{cross_window_attention.1} parent=1 // loop_pre_header
      _
    $region3: #{cross_window_attention.1} parent=1 // loop_header
      %s29 = sphi 0, %s33
      %p30 = scmp.ge.s32.totalorder %s29, 4
      %s37 = sphi 0, %s37
      %s39 = sphi 0, %s37
      %s40 = sphi 0, %s39
      %s54 = sphi 0, %s40
      %s60 = sphi 0, %s62
      %s63 = sphi 0, %s60
      %s64 = sphi 0, %s63
      %s80 = sphi 0, %s64
      %s84 = sphi 0, %s84
      %s86 = sphi 0, %s84
      %s87 = sphi 0, %s86
      %s101 = sphi 0, %s87
      %s105 = sphi 0, %s105
      %s107 = sphi 0, %s105
      %s108 = sphi 0, %s107
      %s122 = sphi 0, %s108
      %s126 = sphi 0, %s126
      %s128 = sphi 0, %s126
      %s129 = sphi 0, %s128
      %s143 = sphi 0, %s129
      %s147 = sphi 0, %s147
      %s149 = sphi 0, %s147
      %s150 = sphi 0, %s149
      %s164 = sphi 0, %s150
      %s168 = sphi 0, %s168
      %s170 = sphi 0, %s168
      %s171 = sphi 0, %s170
      %s185 = sphi 0, %s171
      %s189 = sphi 0, %s189
      %s191 = sphi 0, %s189
      %s192 = sphi 0, %s191
      %s206 = sphi 0, %s192
      %s210 = sphi 0, %s210
      %s212 = sphi 0, %s210
      %s213 = sphi 0, %s212
      %s227 = sphi 0, %s213
      %s233 = sphi 0, %s235
      %s236 = sphi 0, %s233
      %s237 = sphi 0, %s236
      %s253 = sphi 0, %s237
      %s259 = sphi 0, %s261
      %s262 = sphi 0, %s259
      %s263 = sphi 0, %s262
      %s279 = sphi 0, %s263
    $region4: #{cross_window_attention.1} parent=1 // loop_header_branch
      %32 = sbr.rel (%p30) target = $region8
    $region5: #{cross_window_attention.1} parent=1 // loop_body
      %s34 = ssub.s32 %s29, 1
      %s35 = ssub.s32 %s29, 2
      %s36 = sadd.s32 %s29, 1
      %s38 = sadd.s32 %s37, 1
      %p41 = scmp.eq.s32.totalorder %s29, 1
      %p42 = scmp.ne.s32.totalorder %s37, %s39
      %p43 = scmp.eq.s32.totalorder %s29, 0
      %p44 = por %p42, %p43
      %p45 = scmp.ne.s32.totalorder %s37, %s39
      %p46 = scmp.eq.s32.totalorder %s34, 1
      %p47 = por %p45, %p46
      %p48 = scmp.ne.s32.totalorder %s39, %s40
      %p49 = scmp.eq.s32.totalorder %s34, 0
      %p50 = por %p48, %p49
      %p51 = scmp.ne.s32.totalorder %s39, %s40
      %p52 = scmp.eq.s32.totalorder %s35, 1
      %p53 = por %p51, %p52
      %p55 = scmp.ne.s32.totalorder %s40, %s54
      %p56 = scmp.eq.s32.totalorder %s35, 0
      %p57 = por %p55, %p56
      %s58 = ssub.s32 %s29, %s36
      %p59 = scmp.eq.s32.totalorder %s58, 0
      %s61 = sadd.s32 %s60, 1
      %s62 = scalar_select %p59, %s60, %s61
      %p65 = pneg %p59
      %p66 = scmp.eq.s32.totalorder %s29, 1
      %p67 = por %p65, %p66
      %p68 = scmp.ne.s32.totalorder %s60, %s63
      %p69 = scmp.eq.s32.totalorder %s29, 0
      %p70 = por %p68, %p69
      %p71 = scmp.ne.s32.totalorder %s60, %s63
      %p72 = scmp.eq.s32.totalorder %s34, 1
      %p73 = por %p71, %p72
      %p74 = scmp.ne.s32.totalorder %s63, %s64
      %p75 = scmp.eq.s32.totalorder %s34, 0
      %p76 = por %p74, %p75
      %p77 = scmp.ne.s32.totalorder %s63, %s64
      %p78 = scmp.eq.s32.totalorder %s35, 1
      %p79 = por %p77, %p78
      %p81 = scmp.ne.s32.totalorder %s64, %s80
      %p82 = scmp.eq.s32.totalorder %s35, 0
      %p83 = por %p81, %p82
      %s85 = sadd.s32 %s84, 1
      %p88 = scmp.eq.s32.totalorder %s29, 1
      %p89 = scmp.ne.s32.totalorder %s84, %s86
      %p90 = scmp.eq.s32.totalorder %s29, 0
      %p91 = por %p89, %p90
      %p92 = scmp.ne.s32.totalorder %s84, %s86
      %p93 = scmp.eq.s32.totalorder %s34, 1
      %p94 = por %p92, %p93
      %p95 = scmp.ne.s32.totalorder %s86, %s87
      %p96 = scmp.eq.s32.totalorder %s34, 0
      %p97 = por %p95, %p96
      %p98 = scmp.ne.s32.totalorder %s86, %s87
      %p99 = scmp.eq.s32.totalorder %s35, 1
      %p100 = por %p98, %p99
      %p102 = scmp.ne.s32.totalorder %s87, %s101
      %p103 = scmp.eq.s32.totalorder %s35, 0
      %p104 = por %p102, %p103
      %s106 = sadd.s32 %s105, 1
      %p109 = scmp.eq.s32.totalorder %s29, 1
      %p110 = scmp.ne.s32.totalorder %s105, %s107
      %p111 = scmp.eq.s32.totalorder %s29, 0
      %p112 = por %p110, %p111
      %p113 = scmp.ne.s32.totalorder %s105, %s107
      %p114 = scmp.eq.s32.totalorder %s34, 1
      %p115 = por %p113, %p114
      %p116 = scmp.ne.s32.totalorder %s107, %s108
      %p117 = scmp.eq.s32.totalorder %s34, 0
      %p118 = por %p116, %p117
      %p119 = scmp.ne.s32.totalorder %s107, %s108
      %p120 = scmp.eq.s32.totalorder %s35, 1
      %p121 = por %p119, %p120
      %p123 = scmp.ne.s32.totalorder %s108, %s122
      %p124 = scmp.eq.s32.totalorder %s35, 0
      %p125 = por %p123, %p124
      %s127 = sadd.s32 %s126, 1
      %p130 = scmp.eq.s32.totalorder %s29, 1
      %p131 = scmp.ne.s32.totalorder %s126, %s128
      %p132 = scmp.eq.s32.totalorder %s29, 0
      %p133 = por %p131, %p132
      %p134 = scmp.ne.s32.totalorder %s126, %s128
      %p135 = scmp.eq.s32.totalorder %s34, 1
      %p136 = por %p134, %p135
      %p137 = scmp.ne.s32.totalorder %s128, %s129
      %p138 = scmp.eq.s32.totalorder %s34, 0
      %p139 = por %p137, %p138
      %p140 = scmp.ne.s32.totalorder %s128, %s129
      %p141 = scmp.eq.s32.totalorder %s35, 1
      %p142 = por %p140, %p141
      %p144 = scmp.ne.s32.totalorder %s129, %s143
      %p145 = scmp.eq.s32.totalorder %s35, 0
      %p146 = por %p144, %p145
      %s148 = sadd.s32 %s147, 1
      %p151 = scmp.eq.s32.totalorder %s29, 1
      %p152 = scmp.ne.s32.totalorder %s147, %s149
      %p153 = scmp.eq.s32.totalorder %s29, 0
      %p154 = por %p152, %p153
      %p155 = scmp.ne.s32.totalorder %s147, %s149
      %p156 = scmp.eq.s32.totalorder %s34, 1
      %p157 = por %p155, %p156
      %p158 = scmp.ne.s32.totalorder %s149, %s150
      %p159 = scmp.eq.s32.totalorder %s34, 0
      %p160 = por %p158, %p159
      %p161 = scmp.ne.s32.totalorder %s149, %s150
      %p162 = scmp.eq.s32.totalorder %s35, 1
      %p163 = por %p161, %p162
      %p165 = scmp.ne.s32.totalorder %s150, %s164
      %p166 = scmp.eq.s32.totalorder %s35, 0
      %p167 = por %p165, %p166
      %s169 = sadd.s32 %s168, 1
      %p172 = scmp.eq.s32.totalorder %s29, 1
      %p173 = scmp.ne.s32.totalorder %s168, %s170
      %p174 = scmp.eq.s32.totalorder %s29, 0
      %p175 = por %p173, %p174
      %p176 = scmp.ne.s32.totalorder %s168, %s170
      %p177 = scmp.eq.s32.totalorder %s34, 1
      %p178 = por %p176, %p177
      %p179 = scmp.ne.s32.totalorder %s170, %s171
      %p180 = scmp.eq.s32.totalorder %s34, 0
      %p181 = por %p179, %p180
      %p182 = scmp.ne.s32.totalorder %s170, %s171
      %p183 = scmp.eq.s32.totalorder %s35, 1
      %p184 = por %p182, %p183
      %p186 = scmp.ne.s32.totalorder %s171, %s185
      %p187 = scmp.eq.s32.totalorder %s35, 0
      %p188 = por %p186, %p187
      %s190 = sadd.s32 %s189, 1
      %p193 = scmp.eq.s32.totalorder %s29, 1
      %p194 = scmp.ne.s32.totalorder %s189, %s191
      %p195 = scmp.eq.s32.totalorder %s29, 0
      %p196 = por %p194, %p195
      %p197 = scmp.ne.s32.totalorder %s189, %s191
      %p198 = scmp.eq.s32.totalorder %s34, 1
      %p199 = por %p197, %p198
      %p200 = scmp.ne.s32.totalorder %s191, %s192
      %p201 = scmp.eq.s32.totalorder %s34, 0
      %p202 = por %p200, %p201
      %p203 = scmp.ne.s32.totalorder %s191, %s192
      %p204 = scmp.eq.s32.totalorder %s35, 1
      %p205 = por %p203, %p204
      %p207 = scmp.ne.s32.totalorder %s192, %s206
      %p208 = scmp.eq.s32.totalorder %s35, 0
      %p209 = por %p207, %p208
      %s211 = sadd.s32 %s210, 1
      %p214 = scmp.eq.s32.totalorder %s29, 1
      %p215 = scmp.ne.s32.totalorder %s210, %s212
      %p216 = scmp.eq.s32.totalorder %s29, 0
      %p217 = por %p215, %p216
      %p218 = scmp.ne.s32.totalorder %s210, %s212
      %p219 = scmp.eq.s32.totalorder %s34, 1
      %p220 = por %p218, %p219
      %p221 = scmp.ne.s32.totalorder %s212, %s213
      %p222 = scmp.eq.s32.totalorder %s34, 0
      %p223 = por %p221, %p222
      %p224 = scmp.ne.s32.totalorder %s212, %s213
      %p225 = scmp.eq.s32.totalorder %s35, 1
      %p226 = por %p224, %p225
      %p228 = scmp.ne.s32.totalorder %s213, %s227
      %p229 = scmp.eq.s32.totalorder %s35, 0
      %p230 = por %p228, %p229
      %s231 = ssub.s32 %s29, %s36
      %p232 = scmp.eq.s32.totalorder %s231, 0
      %s234 = sadd.s32 %s233, 1
      %s235 = scalar_select %p232, %s233, %s234
      %p238 = pneg %p232
      %p239 = scmp.eq.s32.totalorder %s29, 1
      %p240 = por %p238, %p239
      %p241 = scmp.ne.s32.totalorder %s233, %s236
      %p242 = scmp.eq.s32.totalorder %s29, 0
      %p243 = por %p241, %p242
      %p244 = scmp.ne.s32.totalorder %s233, %s236
      %p245 = scmp.eq.s32.totalorder %s34, 1
      %p246 = por %p244, %p245
      %p247 = scmp.ne.s32.totalorder %s236, %s237
      %p248 = scmp.eq.s32.totalorder %s34, 0
      %p249 = por %p247, %p248
      %p250 = scmp.ne.s32.totalorder %s236, %s237
      %p251 = scmp.eq.s32.totalorder %s35, 1
      %p252 = por %p250, %p251
      %p254 = scmp.ne.s32.totalorder %s237, %s253
      %p255 = scmp.eq.s32.totalorder %s35, 0
      %p256 = por %p254, %p255
      %s257 = ssub.s32 %s29, %s36
      %p258 = scmp.eq.s32.totalorder %s257, 0
      %s260 = sadd.s32 %s259, 1
      %s261 = scalar_select %p258, %s259, %s260
      %p264 = pneg %p258
      %p265 = scmp.eq.s32.totalorder %s29, 1
      %p266 = por %p264, %p265
      %p267 = scmp.ne.s32.totalorder %s259, %s262
      %p268 = scmp.eq.s32.totalorder %s29, 0
      %p269 = por %p267, %p268
      %p270 = scmp.ne.s32.totalorder %s259, %s262
      %p271 = scmp.eq.s32.totalorder %s34, 1
      %p272 = por %p270, %p271
      %p273 = scmp.ne.s32.totalorder %s262, %s263
      %p274 = scmp.eq.s32.totalorder %s34, 0
      %p275 = por %p273, %p274
      %p276 = scmp.ne.s32.totalorder %s262, %s263
      %p277 = scmp.eq.s32.totalorder %s35, 1
      %p278 = por %p276, %p277
      %p280 = scmp.ne.s32.totalorder %s263, %s279
      %p281 = scmp.eq.s32.totalorder %s35, 0
      %p282 = por %p280, %p281
      %p283 = scmp.le.s32.totalorder 1, %s29
      %p284 = scmp.lt.s32.totalorder %s29, 3
      %p285 = pnand %p283, %p284
      %p286 = pneg %p285
      // Predicated region
      $region9: #{cross_window_attention.1} parent=5 // pred_check
        _
      $region10: #{cross_window_attention.1} parent=5 // pred_check_branch
        %288 = sbr.rel (%p285) target = $region12
      $region11: #{cross_window_attention.1} parent=5 // pred_region
        %s289 = ssub.s32 %s29, 1
        // Predicated region
        $region13: #{cross_window_attention.1} parent=11 // pred_check
          %p290 = pneg %p50
        $region14: #{cross_window_attention.1} parent=11 // pred_check_branch
          %292 = sbr.rel (%p290) target = $region16
        $region15: #{cross_window_attention.1} parent=11 // pred_region
          %294 = vsyncadd [#allocation3], 0
          %s295 = sshll.u32 %s0, 4
          %s296 = int_to_ptr.hbm [resolvable:$true] %s295
          %s297 = sshll.u32 [#allocation2], 4
          %s298 = int_to_ptr.vmem [resolvable:$true] %s297
          %303 = dma.hbm_to_vmem [thread:$0]  %s296, 512, %s298, [#allocation3], 128, 128, 8
        $region16: #{cross_window_attention.1} parent=11 // pred_fallthru
          _
        // Predicated region
        $region17: #{cross_window_attention.1} parent=11 // pred_check
          %p304 = pneg %p97
        $region18: #{cross_window_attention.1} parent=11 // pred_check_branch
          %306 = sbr.rel (%p304) target = $region20
        $region19: #{cross_window_attention.1} parent=11 // pred_region
          %308 = vsyncadd [#allocation6], 0
          %s309 = sshll.u32 %s2, 4
          %s310 = int_to_ptr.hbm [resolvable:$true] %s309
          %s311 = sshll.u32 [#allocation7], 4
          %s312 = int_to_ptr.vmem [resolvable:$true] %s311
          %317 = dma.hbm_to_vmem [thread:$0]  %s310, 512, %s312, [#allocation6], 128, 128, 8
        $region20: #{cross_window_attention.1} parent=11 // pred_fallthru
          _
        // Predicated region
        $region21: #{cross_window_attention.1} parent=11 // pred_check
          %p318 = pneg %p118
        $region22: #{cross_window_attention.1} parent=11 // pred_check_branch
          %320 = sbr.rel (%p318) target = $region24
        $region23: #{cross_window_attention.1} parent=11 // pred_region
          _
        $region24: #{cross_window_attention.1} parent=11 // pred_fallthru
          _
        // Predicated region
        $region25: #{cross_window_attention.1} parent=11 // pred_check
          %p321 = pneg %p139
        $region26: #{cross_window_attention.1} parent=11 // pred_check_branch
          %323 = sbr.rel (%p321) target = $region28
        $region27: #{cross_window_attention.1} parent=11 // pred_region
          %325 = vsyncadd [#allocation9], 0
          %s326 = sshll.u32 %s4, 4
          %s327 = int_to_ptr.hbm [resolvable:$true] %s326
          %s328 = sshll.u32 [#allocation8], 4
          %s329 = int_to_ptr.vmem [resolvable:$true] %s328
          %334 = dma.hbm_to_vmem [thread:$0]  %s327, 512, %s329, [#allocation9], 128, 128, 8
        $region28: #{cross_window_attention.1} parent=11 // pred_fallthru
          _
        // Predicated region
        $region29: #{cross_window_attention.1} parent=11 // pred_check
          %p335 = pneg %p160
        $region30: #{cross_window_attention.1} parent=11 // pred_check_branch
          %337 = sbr.rel (%p335) target = $region32
        $region31: #{cross_window_attention.1} parent=11 // pred_region
          _
        $region32: #{cross_window_attention.1} parent=11 // pred_fallthru
          _
        // Predicated region
        $region33: #{cross_window_attention.1} parent=11 // pred_check
          %p338 = pneg %p181
        $region34: #{cross_window_attention.1} parent=11 // pred_check_branch
          %340 = sbr.rel (%p338) target = $region36
        $region35: #{cross_window_attention.1} parent=11 // pred_region
          %342 = vsyncadd [#allocation9], 0
          %s343 = sshll.u32 %s6, 4
          %s344 = int_to_ptr.hbm [resolvable:$true] %s343
          %s345 = sshll.u32 [#allocation10], 4
          %s346 = int_to_ptr.vmem [resolvable:$true] %s345
          %351 = dma.hbm_to_vmem [thread:$0]  %s344, 1024, %s346, [#allocation9], 128, 128, 8
        $region36: #{cross_window_attention.1} parent=11 // pred_fallthru
          _
        // Predicated region
        $region37: #{cross_window_attention.1} parent=11 // pred_check
          %p352 = pneg %p202
        $region38: #{cross_window_attention.1} parent=11 // pred_check_branch
          %354 = sbr.rel (%p352) target = $region40
        $region39: #{cross_window_attention.1} parent=11 // pred_region
          %356 = vsyncadd [#allocation12], 0
          %s357 = sshll.u32 %s7, 4
          %s358 = int_to_ptr.hbm [resolvable:$true] %s357
          %s359 = sshll.u32 [#allocation11], 4
          %s360 = int_to_ptr.vmem [resolvable:$true] %s359
          %365 = dma.hbm_to_vmem [thread:$0]  %s358, 512, %s360, [#allocation12], 128, 128, 8
        $region40: #{cross_window_attention.1} parent=11 // pred_fallthru
          _
        // Predicated region
        $region41: #{cross_window_attention.1} parent=11 // pred_check
          %p366 = pneg %p223
        $region42: #{cross_window_attention.1} parent=11 // pred_check_branch
          %368 = sbr.rel (%p366) target = $region44
        $region43: #{cross_window_attention.1} parent=11 // pred_region
          _
        $region44: #{cross_window_attention.1} parent=11 // pred_fallthru
          _
      $region12: #{cross_window_attention.1} parent=5 // pred_fallthru
        _
      %p369 = scmp.lt.s32.totalorder %s29, 2
      // Predicated region
      $region45: #{cross_window_attention.1} parent=5 // pred_check
        %p370 = pneg %p369
      $region46: #{cross_window_attention.1} parent=5 // pred_check_branch
        %372 = sbr.rel (%p370) target = $region48
      $region47: #{cross_window_attention.1} parent=5 // pred_region
        // Predicated region
        $region49: #{cross_window_attention.1} parent=47 // pred_check
          %p373 = pneg %p70
        $region50: #{cross_window_attention.1} parent=47 // pred_check_branch
          %375 = sbr.rel (%p373) target = $region52
        $region51: #{cross_window_attention.1} parent=47 // pred_region
          %s376 = sand.u32 %s29, 1
          %s377 = scalar_lea.sflag [#allocation6], %s376
          %s378 = sand.u32 %s60, 1
          %s379 = smul.addr %s378, 32
          %s380 = scalar_lea.vmem [#allocation5], %s379
          %s381 = smul.u32 2, %s29
          %383 = vsyncadd %s377, 0
          %s384 = smul.addr %s381, 2
          %s385 = smul.addr %s384, 8
          %s386 = scalar_lea.hbm %s1, %s385
          %s387 = sshll.u32 %s386, 4
          %s388 = int_to_ptr.hbm [resolvable:$true] %s387
          %s389 = sshll.u32 %s380, 4
          %s390 = int_to_ptr.vmem [resolvable:$true] %s389
          %395 = dma.hbm_to_vmem [thread:$0]  %s388, 512, %s390, %s377, 128, 128, 8
        $region52: #{cross_window_attention.1} parent=47 // pred_fallthru
          _
      $region48: #{cross_window_attention.1} parent=5 // pred_fallthru
        _
      %p396 = scmp.le.s32.totalorder 1, %s29
      %p397 = scmp.lt.s32.totalorder %s29, 3
      %p398 = pnand %p396, %p397
      %p399 = pneg %p398
      // Predicated region
      $region53: #{cross_window_attention.1} parent=5 // pred_check
        _
      $region54: #{cross_window_attention.1} parent=5 // pred_check_branch
        %401 = sbr.rel (%p398) target = $region56
      $region55: #{cross_window_attention.1} parent=5 // pred_region
        %s402 = ssub.s32 %s29, 1
        // Predicated region
        $region57: #{cross_window_attention.1} parent=55 // pred_check
          %p403 = pneg %p50
        $region58: #{cross_window_attention.1} parent=55 // pred_check_branch
          %405 = sbr.rel (%p403) target = $region60
        $region59: #{cross_window_attention.1} parent=55 // pred_region
          %407 = dma.done [#allocation3], 512
        $region60: #{cross_window_attention.1} parent=55 // pred_fallthru
          _
        %s408 = sand.u32 %s34, 1
        %s409 = scalar_lea.sflag [#allocation6], %s408
        %s410 = sand.u32 %s63, 1
        %s411 = smul.addr %s410, 32
        %s412 = scalar_lea.vmem [#allocation5], %s411
        // Predicated region
        $region61: #{cross_window_attention.1} parent=55 // pred_check
          %p413 = pneg %p76
        $region62: #{cross_window_attention.1} parent=55 // pred_check_branch
          %415 = sbr.rel (%p413) target = $region64
        $region63: #{cross_window_attention.1} parent=55 // pred_region
          %417 = dma.done %s409, 512
        $region64: #{cross_window_attention.1} parent=55 // pred_fallthru
          _
        // Predicated region
        $region65: #{cross_window_attention.1} parent=55 // pred_check
          %p418 = pneg %p97
        $region66: #{cross_window_attention.1} parent=55 // pred_check_branch
          %420 = sbr.rel (%p418) target = $region68
        $region67: #{cross_window_attention.1} parent=55 // pred_region
          %422 = dma.done [#allocation6], 512
        $region68: #{cross_window_attention.1} parent=55 // pred_fallthru
          _
        // Predicated region
        $region69: #{cross_window_attention.1} parent=55 // pred_check
          %p423 = pneg %p139
        $region70: #{cross_window_attention.1} parent=55 // pred_check_branch
          %425 = sbr.rel (%p423) target = $region72
        $region71: #{cross_window_attention.1} parent=55 // pred_region
          %427 = dma.done [#allocation9], 512
        $region72: #{cross_window_attention.1} parent=55 // pred_fallthru
          _
        // Predicated region
        $region73: #{cross_window_attention.1} parent=55 // pred_check
          %p428 = pneg %p181
        $region74: #{cross_window_attention.1} parent=55 // pred_check_branch
          %430 = sbr.rel (%p428) target = $region76
        $region75: #{cross_window_attention.1} parent=55 // pred_region
          %432 = dma.done [#allocation9], 1024
        $region76: #{cross_window_attention.1} parent=55 // pred_fallthru
          _
        // Predicated region
        $region77: #{cross_window_attention.1} parent=55 // pred_check
          %p433 = pneg %p202
        $region78: #{cross_window_attention.1} parent=55 // pred_check_branch
          %435 = sbr.rel (%p433) target = $region80
        $region79: #{cross_window_attention.1} parent=55 // pred_region
          %437 = dma.done [#allocation12], 512
        $region80: #{cross_window_attention.1} parent=55 // pred_fallthru
          _
        %p438 = pneg %p50
        %p439 = pneg %p47
        %s440 = sand.u32 %s34, 1
        %s441 = scalar_lea.sflag [#allocation6], %s440
        %s442 = sand.u32 %s63, 1
        %s443 = smul.addr %s442, 32
        %s444 = scalar_lea.vmem [#allocation5], %s443
        %p445 = pneg %p76
        %p446 = pneg %p73
        %p447 = pneg %p97
        %p448 = pneg %p94
        %p449 = pneg %p118
        %p450 = pneg %p115
        %p451 = pneg %p139
        %p452 = pneg %p136
        %p453 = pneg %p160
        %p454 = pneg %p157
        %p455 = pneg %p181
        %p456 = pneg %p178
        %p457 = pneg %p202
        %p458 = pneg %p199
        %p459 = pneg %p223
        %p460 = pneg %p220
        %p461 = pneg %p249
        %p462 = pneg %p246
        %s463 = sand.u32 %s236, 1
        %s464 = scalar_lea.sflag [#allocation4], %s463
        %s465 = sand.u32 %s236, 1
        %s466 = smul.addr %s465, 128
        %s467 = scalar_lea.vmem [#allocation13], %s466
        %p468 = pneg %p275
        %p469 = pneg %p272
        %s470 = sand.u32 %s262, 1
        %s471 = scalar_lea.sflag [#allocation15], %s470
        %s472 = sand.u32 %s262, 1
        %s473 = smul.addr %s472, 16
        %s474 = scalar_lea.vmem [#allocation14], %s473
        %s475 = smul.u32 2, %s34
        %s476 = smul.u32 2, %s34
        %s477 = smul.u32 %s34, 2
        %p478 = scmp.lt.s32.totalorder %s477, 0
        %s479 = ssub.s32 0, %s477
        %s480 = scalar_select %p478, %s479, %s477
        %s481 = sand.u32 %s480, 1
        %s482 = ssub.s32 0, %s481
        %s483 = scalar_select %p478, %s482, %s481
        %p484 = scmp.ne.s32.totalorder %s483, 0
        %p485 = scmp.lt.s32.totalorder %s483, 0
        %p486 = pnand %p485, %p484
        %p487 = pneg %p486
        %s488 = sadd.s32 %s483, 2
        %s489 = scalar_select %p487, %s488, %s483
        %s490 = smul.u32 %s489, 16
        %s491 = scalar_lea.vmem [#allocation2], %s490
        %v492 = vld [vmem:[%s491] sm:$0xff]
        %v493 = vld [vmem:[%s491 + $0x8] sm:$0xff]
        %v494 = vld [vmem:[#allocation7] sm:$0xff]
        %v495 = vld [vmem:[#allocation7 + $0x8] sm:$0xff]
        %v496 = vld [vmem:[#allocation7 + $0x10] sm:$0xff]
        %v497 = vld [vmem:[#allocation7 + $0x18] sm:$0xff]
        %v498 = vld [vmem:[%s3] sm:$0x1]
        %v500 = vperm.slane %v498, 0
        %vm502 = vcmask 261120
        %v504 = vsel %vm502, %v492, 0
        %v507 = vsel %vm502, %v493, 0
        %509 = vmatpush.msra.mxu0 0.0
        %510 = vmatpush.msra.mxu0 0.0
        %511 = vmatpush.msra.mxu0 0.0
        %512 = vmatpush.msra.mxu0 0.0
        %513 = vmatpush.msra.mxu0 0.0
        %514 = vmatpush.msra.mxu0 0.0
        %515 = vmatpush.msra.mxu0 0.0
        %516 = vmatpush.msra.mxu0 0.0
        %517 = vmatpush.msra.mxu0 0.0
        %518 = vmatpush.msra.mxu0 0.0
        %519 = vmatpush.msra.mxu0 0.0
        %520 = vmatpush.msra.mxu0 0.0
        %521 = vmatpush.msra.mxu0 %v497
        %522 = vmatpush.msra.mxu0 %v496
        %523 = vmatpush.msra.mxu0 %v495
        %524 = vmatpush.msra.mxu0 %v494
        %525 = vmatmul.f32.gmra.mxu0 %v504
        %v526 = vpop.f32.mrf.mxu0
        %v527 = vadd.f32 %v500, %v526
        %528 = vmatmul.f32.gmra.mxu0 %v507
        %v529 = vpop.f32.mrf.mxu0
        %v530 = vadd.f32 %v500, %v529
        %531 = vdwg.mxu0
        %v532 = vld [vmem:[%s412] sm:$0xff]
        %v533 = vld [vmem:[%s412 + $0x8] sm:$0xff]
        %v534 = vld [vmem:[#allocation8] sm:$0xff]
        %v535 = vld [vmem:[#allocation8 + $0x8] sm:$0xff]
        %v536 = vld [vmem:[#allocation8 + $0x10] sm:$0xff]
        %v537 = vld [vmem:[#allocation8 + $0x18] sm:$0xff]
        %v538 = vld [vmem:[%s5] sm:$0x1]
        %v540 = vperm.slane %v538, 0
        %v543 = vsel %vm502, %v532, 0
        %v546 = vsel %vm502, %v533, 0
        %548 = vmatpush.msra.mxu0 0.0
        %549 = vmatpush.msra.mxu0 0.0
        %550 = vmatpush.msra.mxu0 0.0
        %551 = vmatpush.msra.mxu0 0.0
        %552 = vmatpush.msra.mxu0 0.0
        %553 = vmatpush.msra.mxu0 0.0
        %554 = vmatpush.msra.mxu0 0.0
        %555 = vmatpush.msra.mxu0 0.0
        %556 = vmatpush.msra.mxu0 0.0
        %557 = vmatpush.msra.mxu0 0.0
        %558 = vmatpush.msra.mxu0 0.0
        %559 = vmatpush.msra.mxu0 0.0
        %560 = vmatpush.msra.mxu0 %v537
        %561 = vmatpush.msra.mxu0 %v536
        %562 = vmatpush.msra.mxu0 %v535
        %563 = vmatpush.msra.mxu0 %v534
        %564 = vmatmul.f32.gmra.mxu0 %v543
        %v565 = vpop.f32.mrf.mxu0
        %v566 = vadd.f32 %v540, %v565
        %567 = vmatmul.f32.gmra.mxu0 %v546
        %v568 = vpop.f32.mrf.mxu0
        %v569 = vadd.f32 %v540, %v568
        %570 = vdwg.mxu0
        %v571 = vld [vmem:[#allocation10] sm:$0xff]
        %v572 = vld [vmem:[#allocation10 + $0x8] sm:$0xff]
        %vm573 = vcmask 64512
        %v575 = vsel %vm573, %v527, 0
        %v578 = vsel %vm573, %v530, 0
        %v581 = vsel %vm573, %v566, 0
        %v584 = vsel %vm573, %v569, 0
        %586 = vmatpush.xpose.msra.mxu0 0.0
        %587 = vmatpush.xpose.msra.mxu0 0.0
        %588 = vmatpush.xpose.msra.mxu0 0.0
        %589 = vmatpush.xpose.msra.mxu0 0.0
        %590 = vmatpush.xpose.msra.mxu0 0.0
        %591 = vmatpush.xpose.msra.mxu0 0.0
        %592 = vmatpush.xpose.msra.mxu0 0.0
        %593 = vmatpush.xpose.msra.mxu0 0.0
        %594 = vmatpush.xpose.msra.mxu0 0.0
        %595 = vmatpush.xpose.msra.mxu0 0.0
        %596 = vmatpush.xpose.msra.mxu0 0.0
        %597 = vmatpush.xpose.msra.mxu0 0.0
        %598 = vmatpush.xpose.msra.mxu0 0.0
        %599 = vmatpush.xpose.msra.mxu0 0.0
        %600 = vmatpush.xpose.msra.mxu0 %v584
        %601 = vmatpush.xpose.msra.mxu0 %v581
        %602 = vmatmul.f32.gmra.mxu0 %v575
        %v603 = vpop.f32.mrf.mxu0
        %v604 = vadd.f32 %v571, %v603
        %605 = vmatmul.f32.gmra.mxu0 %v578
        %v606 = vpop.f32.mrf.mxu0
        %v607 = vadd.f32 %v572, %v606
        %608 = vdwg.mxu0
        %vm609 = vcmask 130048
        %v610 = vsel %vm609, %v604, -inf
        %611 = vmax.xlane.f32.xlu0 %v610
        %v612 = vpop.xlane.xlu0 %611
        %v613 = vsel %vm609, %v607, -inf
        %614 = vmax.xlane.f32.xlu0 %v613
        %v615 = vpop.xlane.xlu0 %614
        %v616 = vsub.f32 %v604, %v612
        %v617 = vsub.f32 %v607, %v615
        %v618 = vmul.f32 %v616, 1.442695
        %v619 = vpow.pop %v618
        %v620 = vmul.f32 %v617, 1.442695
        %v621 = vpow.pop %v620
        %v622 = vsel %vm609, %v619, 0.0
        %623 = vadd.xlane.f32.xlu0 %v622
        %v624 = vpop.xlane.xlu0 %623
        %v625 = vsel %vm609, %v621, 0.0
        %626 = vadd.xlane.f32.xlu0 %v625
        %v627 = vpop.xlane.xlu0 %626
        %v628 = vrcp.pop %v624
        %v629 = vrcp.pop %v627
        %v630 = vmul.f32 %v619, %v628
        %v631 = vmul.f32 %v621, %v629
        %632 = vst.msk [vmem:[%s467] sm:$0xff] %vm609, %v630
        %633 = vst.msk [vmem:[%s467 + $0x8] sm:$0xff] %vm609, %v631
        %634 = vrot.lane.b32.xlu0 %v566, 96
        %v635 = vpop.permute.xlu0 %634
        %636 = vrot.lane.b32.xlu0 %v569, 96
        %v637 = vpop.permute.xlu0 %636
        %v641 = vsel %vm609, %v630, 0
        %v644 = vsel %vm609, %v631, 0
        %646 = vmatpush.msra.mxu0 0.0
        %647 = vmatpush.msra.mxu0 0.0
        %648 = vmatpush.msra.mxu0 0.0
        %649 = vmatpush.msra.mxu0 0.0
        %650 = vmatpush.msra.mxu0 0.0
        %651 = vmatpush.msra.mxu0 0.0
        %652 = vmatpush.msra.mxu0 0.0
        %653 = vmatpush.msra.mxu0 0.0
        %654 = vmatpush.msra.mxu0 0.0
        %655 = vmatpush.msra.mxu0 0.0
        %656 = vmatpush.msra.mxu0 0.0
        %657 = vmatpush.msra.mxu0 0.0
        %658 = vmatpush.msra.mxu0 0.0
        %659 = vmatpush.msra.mxu0 0.0
        %660 = vmatpush.msra.mxu0 %v637
        %661 = vmatpush.msra.mxu0 %v635
        %662 = vmatmul.f32.gmra.mxu0 %v641
        %v663 = vpop.f32.mrf.mxu0
        %v664 = vadd.f32 0.0, %v663
        %665 = vmatmul.f32.gmra.mxu0 %v644
        %v666 = vpop.f32.mrf.mxu0
        %v667 = vadd.f32 0.0, %v666
        %668 = vdwg.mxu0
        %s669 = scalar_lea.vmem [#allocation10], 16
        %v670 = vld [vmem:[%s669] sm:$0xff]
        %v671 = vld [vmem:[%s669 + $0x8] sm:$0xff]
        %672 = vrot.lane.b32.xlu0 %v527, 120
        %v673 = vpop.permute.xlu0 %672
        %674 = vrot.lane.b32.xlu0 %v530, 120
        %v675 = vpop.permute.xlu0 %674
        %676 = vrot.lane.b32.xlu0 %v566, 120
        %v677 = vpop.permute.xlu0 %676
        %678 = vrot.lane.b32.xlu0 %v569, 120
        %v679 = vpop.permute.xlu0 %678
        %v680 = vsel %vm573, %v673, 0
        %v682 = vsel %vm573, %v675, 0
        %v684 = vsel %vm573, %v677, 0
        %v686 = vsel %vm573, %v679, 0
        %688 = vmatpush.xpose.msra.mxu0 0.0
        %689 = vmatpush.xpose.msra.mxu0 0.0
        %690 = vmatpush.xpose.msra.mxu0 0.0
        %691 = vmatpush.xpose.msra.mxu0 0.0
        %692 = vmatpush.xpose.msra.mxu0 0.0
        %693 = vmatpush.xpose.msra.mxu0 0.0
        %694 = vmatpush.xpose.msra.mxu0 0.0
        %695 = vmatpush.xpose.msra.mxu0 0.0
        %696 = vmatpush.xpose.msra.mxu0 0.0
        %697 = vmatpush.xpose.msra.mxu0 0.0
        %698 = vmatpush.xpose.msra.mxu0 0.0
        %699 = vmatpush.xpose.msra.mxu0 0.0
        %700 = vmatpush.xpose.msra.mxu0 0.0
        %701 = vmatpush.xpose.msra.mxu0 0.0
        %702 = vmatpush.xpose.msra.mxu0 %v686
        %703 = vmatpush.xpose.msra.mxu0 %v684
        %704 = vmatmul.f32.gmra.mxu0 %v680
        %v705 = vpop.f32.mrf.mxu0
        %v706 = vadd.f32 %v670, %v705
        %707 = vmatmul.f32.gmra.mxu0 %v682
        %v708 = vpop.f32.mrf.mxu0
        %v709 = vadd.f32 %v671, %v708
        %710 = vdwg.mxu0
        %v711 = vsel %vm609, %v706, -inf
        %712 = vmax.xlane.f32.xlu0 %v711
        %v713 = vpop.xlane.xlu0 %712
        %v714 = vsel %vm609, %v709, -inf
        %715 = vmax.xlane.f32.xlu0 %v714
        %v716 = vpop.xlane.xlu0 %715
        %v717 = vsub.f32 %v706, %v713
        %v718 = vsub.f32 %v709, %v716
        %v719 = vmul.f32 %v717, 1.442695
        %v720 = vpow.pop %v719
        %v721 = vmul.f32 %v718, 1.442695
        %v722 = vpow.pop %v721
        %v723 = vsel %vm609, %v720, 0.0
        %724 = vadd.xlane.f32.xlu0 %v723
        %v725 = vpop.xlane.xlu0 %724
        %v726 = vsel %vm609, %v722, 0.0
        %727 = vadd.xlane.f32.xlu0 %v726
        %v728 = vpop.xlane.xlu0 %727
        %v729 = vrcp.pop %v725
        %v730 = vrcp.pop %v728
        %v731 = vmul.f32 %v720, %v729
        %v732 = vmul.f32 %v722, %v730
        %s733 = scalar_lea.vmem %s467, 16 [#allocation13]
        %734 = vst.msk [vmem:[%s733] sm:$0xff] %vm609, %v731
        %735 = vst.msk [vmem:[%s733 + $0x8] sm:$0xff] %vm609, %v732
        %736 = vrot.lane.b32.xlu0 %v566, 88
        %v737 = vpop.permute.xlu0 %736
        %738 = vrot.lane.b32.xlu0 %v569, 88
        %v739 = vpop.permute.xlu0 %738
        %v743 = vsel %vm609, %v731, 0
        %v746 = vsel %vm609, %v732, 0
        %748 = vmatpush.msra.mxu0 0.0
        %749 = vmatpush.msra.mxu0 0.0
        %750 = vmatpush.msra.mxu0 0.0
        %751 = vmatpush.msra.mxu0 0.0
        %752 = vmatpush.msra.mxu0 0.0
        %753 = vmatpush.msra.mxu0 0.0
        %754 = vmatpush.msra.mxu0 0.0
        %755 = vmatpush.msra.mxu0 0.0
        %756 = vmatpush.msra.mxu0 0.0
        %757 = vmatpush.msra.mxu0 0.0
        %758 = vmatpush.msra.mxu0 0.0
        %759 = vmatpush.msra.mxu0 0.0
        %760 = vmatpush.msra.mxu0 0.0
        %761 = vmatpush.msra.mxu0 0.0
        %762 = vmatpush.msra.mxu0 %v739
        %763 = vmatpush.msra.mxu0 %v737
        %764 = vmatmul.f32.gmra.mxu0 %v743
        %v765 = vpop.f32.mrf.mxu0
        %v766 = vadd.f32 0.0, %v765
        %767 = vmatmul.f32.gmra.mxu0 %v746
        %v768 = vpop.f32.mrf.mxu0
        %v769 = vadd.f32 0.0, %v768
        %770 = vdwg.mxu0
        %s771 = scalar_lea.vmem [#allocation10], 32
        %v772 = vld [vmem:[%s771] sm:$0xff]
        %v773 = vld [vmem:[%s771 + $0x8] sm:$0xff]
        %774 = vrot.lane.b32.xlu0 %v527, 112
        %v775 = vpop.permute.xlu0 %774
        %776 = vrot.lane.b32.xlu0 %v530, 112
        %v777 = vpop.permute.xlu0 %776
        %778 = vrot.lane.b32.xlu0 %v566, 112
        %v779 = vpop.permute.xlu0 %778
        %780 = vrot.lane.b32.xlu0 %v569, 112
        %v781 = vpop.permute.xlu0 %780
        %v782 = vsel %vm573, %v775, 0
        %v784 = vsel %vm573, %v777, 0
        %v786 = vsel %vm573, %v779, 0
        %v788 = vsel %vm573, %v781, 0
        %790 = vmatpush.xpose.msra.mxu0 0.0
        %791 = vmatpush.xpose.msra.mxu0 0.0
        %792 = vmatpush.xpose.msra.mxu0 0.0
        %793 = vmatpush.xpose.msra.mxu0 0.0
        %794 = vmatpush.xpose.msra.mxu0 0.0
        %795 = vmatpush.xpose.msra.mxu0 0.0
        %796 = vmatpush.xpose.msra.mxu0 0.0
        %797 = vmatpush.xpose.msra.mxu0 0.0
        %798 = vmatpush.xpose.msra.mxu0 0.0
        %799 = vmatpush.xpose.msra.mxu0 0.0
        %800 = vmatpush.xpose.msra.mxu0 0.0
        %801 = vmatpush.xpose.msra.mxu0 0.0
        %802 = vmatpush.xpose.msra.mxu0 0.0
        %803 = vmatpush.xpose.msra.mxu0 0.0
        %804 = vmatpush.xpose.msra.mxu0 %v788
        %805 = vmatpush.xpose.msra.mxu0 %v786
        %806 = vmatmul.f32.gmra.mxu0 %v782
        %v807 = vpop.f32.mrf.mxu0
        %v808 = vadd.f32 %v772, %v807
        %809 = vmatmul.f32.gmra.mxu0 %v784
        %v810 = vpop.f32.mrf.mxu0
        %v811 = vadd.f32 %v773, %v810
        %812 = vdwg.mxu0
        %v813 = vsel %vm609, %v808, -inf
        %814 = vmax.xlane.f32.xlu0 %v813
        %v815 = vpop.xlane.xlu0 %814
        %v816 = vsel %vm609, %v811, -inf
        %817 = vmax.xlane.f32.xlu0 %v816
        %v818 = vpop.xlane.xlu0 %817
        %v819 = vsub.f32 %v808, %v815
        %v820 = vsub.f32 %v811, %v818
        %v821 = vmul.f32 %v819, 1.442695
        %v822 = vpow.pop %v821
        %v823 = vmul.f32 %v820, 1.442695
        %v824 = vpow.pop %v823
        %v825 = vsel %vm609, %v822, 0.0
        %826 = vadd.xlane.f32.xlu0 %v825
        %v827 = vpop.xlane.xlu0 %826
        %v828 = vsel %vm609, %v824, 0.0
        %829 = vadd.xlane.f32.xlu0 %v828
        %v830 = vpop.xlane.xlu0 %829
        %v831 = vrcp.pop %v827
        %v832 = vrcp.pop %v830
        %v833 = vmul.f32 %v822, %v831
        %v834 = vmul.f32 %v824, %v832
        %s835 = scalar_lea.vmem %s467, 32 [#allocation13]
        %836 = vst.msk [vmem:[%s835] sm:$0xff] %vm609, %v833
        %837 = vst.msk [vmem:[%s835 + $0x8] sm:$0xff] %vm609, %v834
        %838 = vrot.lane.b32.xlu0 %v566, 80
        %v839 = vpop.permute.xlu0 %838
        %840 = vrot.lane.b32.xlu0 %v569, 80
        %v841 = vpop.permute.xlu0 %840
        %v845 = vsel %vm609, %v833, 0
        %v848 = vsel %vm609, %v834, 0
        %850 = vmatpush.msra.mxu0 0.0
        %851 = vmatpush.msra.mxu0 0.0
        %852 = vmatpush.msra.mxu0 0.0
        %853 = vmatpush.msra.mxu0 0.0
        %854 = vmatpush.msra.mxu0 0.0
        %855 = vmatpush.msra.mxu0 0.0
        %856 = vmatpush.msra.mxu0 0.0
        %857 = vmatpush.msra.mxu0 0.0
        %858 = vmatpush.msra.mxu0 0.0
        %859 = vmatpush.msra.mxu0 0.0
        %860 = vmatpush.msra.mxu0 0.0
        %861 = vmatpush.msra.mxu0 0.0
        %862 = vmatpush.msra.mxu0 0.0
        %863 = vmatpush.msra.mxu0 0.0
        %864 = vmatpush.msra.mxu0 %v841
        %865 = vmatpush.msra.mxu0 %v839
        %866 = vmatmul.f32.gmra.mxu0 %v845
        %v867 = vpop.f32.mrf.mxu0
        %v868 = vadd.f32 0.0, %v867
        %869 = vmatmul.f32.gmra.mxu0 %v848
        %v870 = vpop.f32.mrf.mxu0
        %v871 = vadd.f32 0.0, %v870
        %872 = vdwg.mxu0
        %s873 = scalar_lea.vmem [#allocation10], 48
        %v874 = vld [vmem:[%s873] sm:$0xff]
        %v875 = vld [vmem:[%s873 + $0x8] sm:$0xff]
        %876 = vrot.lane.b32.xlu0 %v527, 104
        %v877 = vpop.permute.xlu0 %876
        %878 = vrot.lane.b32.xlu0 %v530, 104
        %v879 = vpop.permute.xlu0 %878
        %880 = vrot.lane.b32.xlu0 %v566, 104
        %v881 = vpop.permute.xlu0 %880
        %882 = vrot.lane.b32.xlu0 %v569, 104
        %v883 = vpop.permute.xlu0 %882
        %v884 = vsel %vm573, %v877, 0
        %v886 = vsel %vm573, %v879, 0
        %v888 = vsel %vm573, %v881, 0
        %v890 = vsel %vm573, %v883, 0
        %892 = vmatpush.xpose.msra.mxu0 0.0
        %893 = vmatpush.xpose.msra.mxu0 0.0
        %894 = vmatpush.xpose.msra.mxu0 0.0
        %895 = vmatpush.xpose.msra.mxu0 0.0
        %896 = vmatpush.xpose.msra.mxu0 0.0
        %897 = vmatpush.xpose.msra.mxu0 0.0
        %898 = vmatpush.xpose.msra.mxu0 0.0
        %899 = vmatpush.xpose.msra.mxu0 0.0
        %900 = vmatpush.xpose.msra.mxu0 0.0
        %901 = vmatpush.xpose.msra.mxu0 0.0
        %902 = vmatpush.xpose.msra.mxu0 0.0
        %903 = vmatpush.xpose.msra.mxu0 0.0
        %904 = vmatpush.xpose.msra.mxu0 0.0
        %905 = vmatpush.xpose.msra.mxu0 0.0
        %906 = vmatpush.xpose.msra.mxu0 %v890
        %907 = vmatpush.xpose.msra.mxu0 %v888
        %908 = vmatmul.f32.gmra.mxu0 %v884
        %v909 = vpop.f32.mrf.mxu0
        %v910 = vadd.f32 %v874, %v909
        %911 = vmatmul.f32.gmra.mxu0 %v886
        %v912 = vpop.f32.mrf.mxu0
        %v913 = vadd.f32 %v875, %v912
        %914 = vdwg.mxu0
        %v915 = vsel %vm609, %v910, -inf
        %916 = vmax.xlane.f32.xlu0 %v915
        %v917 = vpop.xlane.xlu0 %916
        %v918 = vsel %vm609, %v913, -inf
        %919 = vmax.xlane.f32.xlu0 %v918
        %v920 = vpop.xlane.xlu0 %919
        %v921 = vsub.f32 %v910, %v917
        %v922 = vsub.f32 %v913, %v920
        %v923 = vmul.f32 %v921, 1.442695
        %v924 = vpow.pop %v923
        %v925 = vmul.f32 %v922, 1.442695
        %v926 = vpow.pop %v925
        %v927 = vsel %vm609, %v924, 0.0
        %928 = vadd.xlane.f32.xlu0 %v927
        %v929 = vpop.xlane.xlu0 %928
        %v930 = vsel %vm609, %v926, 0.0
        %931 = vadd.xlane.f32.xlu0 %v930
        %v932 = vpop.xlane.xlu0 %931
        %v933 = vrcp.pop %v929
        %v934 = vrcp.pop %v932
        %v935 = vmul.f32 %v924, %v933
        %v936 = vmul.f32 %v926, %v934
        %s937 = scalar_lea.vmem %s467, 48 [#allocation13]
        %938 = vst.msk [vmem:[%s937] sm:$0xff] %vm609, %v935
        %939 = vst.msk [vmem:[%s937 + $0x8] sm:$0xff] %vm609, %v936
        %940 = vrot.lane.b32.xlu0 %v566, 72
        %v941 = vpop.permute.xlu0 %940
        %942 = vrot.lane.b32.xlu0 %v569, 72
        %v943 = vpop.permute.xlu0 %942
        %v947 = vsel %vm609, %v935, 0
        %v950 = vsel %vm609, %v936, 0
        %952 = vmatpush.msra.mxu0 0.0
        %953 = vmatpush.msra.mxu0 0.0
        %954 = vmatpush.msra.mxu0 0.0
        %955 = vmatpush.msra.mxu0 0.0
        %956 = vmatpush.msra.mxu0 0.0
        %957 = vmatpush.msra.mxu0 0.0
        %958 = vmatpush.msra.mxu0 0.0
        %959 = vmatpush.msra.mxu0 0.0
        %960 = vmatpush.msra.mxu0 0.0
        %961 = vmatpush.msra.mxu0 0.0
        %962 = vmatpush.msra.mxu0 0.0
        %963 = vmatpush.msra.mxu0 0.0
        %964 = vmatpush.msra.mxu0 0.0
        %965 = vmatpush.msra.mxu0 0.0
        %966 = vmatpush.msra.mxu0 %v943
        %967 = vmatpush.msra.mxu0 %v941
        %968 = vmatmul.f32.gmra.mxu0 %v947
        %v969 = vpop.f32.mrf.mxu0
        %v970 = vadd.f32 0.0, %v969
        %971 = vmatmul.f32.gmra.mxu0 %v950
        %v972 = vpop.f32.mrf.mxu0
        %v973 = vadd.f32 0.0, %v972
        %974 = vdwg.mxu0
        %977 = vrot.lane.b32.xlu0 %v766, 8
        %v978 = vpop.permute.xlu0 %977
        %979 = vrot.lane.b32.xlu0 %v769, 8
        %v980 = vpop.permute.xlu0 %979
        %985 = vrot.lane.b32.xlu0 %v868, 16
        %v986 = vpop.permute.xlu0 %985
        %987 = vrot.lane.b32.xlu0 %v871, 16
        %v988 = vpop.permute.xlu0 %987
        %993 = vrot.lane.b32.xlu0 %v970, 24
        %v994 = vpop.permute.xlu0 %993
        %995 = vrot.lane.b32.xlu0 %v973, 24
        %v996 = vpop.permute.xlu0 %995
        %v999 = vsel %vm573, %v664, %v978
        %v1000 = vsel %vm573, %v667, %v980
        %v1001 = vsel %vm609, %v999, %v986
        %v1002 = vsel %vm609, %v1000, %v988
        %vm1003 = vcmask 195584
        %v1004 = vsel %vm1003, %v1001, %v994
        %v1005 = vsel %vm1003, %v1002, %v996
        %v1006 = vadd.f32 %v1004, 0.0
        %v1007 = vadd.f32 %v1005, 0.0
        %s1008 = sadd.s32 %s477, 1
        %p1009 = scmp.lt.s32.totalorder %s1008, 0
        %s1010 = ssub.s32 0, %s1008
        %s1011 = scalar_select %p1009, %s1010, %s1008
        %s1012 = sand.u32 %s1011, 1
        %s1013 = ssub.s32 0, %s1012
        %s1014 = scalar_select %p1009, %s1013, %s1012
        %p1015 = scmp.ne.s32.totalorder %s1014, 0
        %p1016 = scmp.lt.s32.totalorder %s1014, 0
        %p1017 = pnand %p1016, %p1015
        %p1018 = pneg %p1017
        %s1019 = sadd.s32 %s1014, 2
        %s1020 = scalar_select %p1018, %s1019, %s1014
        %s1021 = smul.u32 %s1020, 16
        %s1022 = scalar_lea.vmem [#allocation2], %s1021
        %v1023 = vld [vmem:[%s1022] sm:$0xff]
        %v1024 = vld [vmem:[%s1022 + $0x8] sm:$0xff]
        %v1025 = vld [vmem:[#allocation7] sm:$0xff]
        %v1026 = vld [vmem:[#allocation7 + $0x8] sm:$0xff]
        %v1027 = vld [vmem:[#allocation7 + $0x10] sm:$0xff]
        %v1028 = vld [vmem:[#allocation7 + $0x18] sm:$0xff]
        %v1029 = vld [vmem:[%s3] sm:$0x1]
        %v1031 = vperm.slane %v1029, 0
        %v1034 = vsel %vm502, %v1023, 0
        %v1037 = vsel %vm502, %v1024, 0
        %1039 = vmatpush.msra.mxu0 0.0
        %1040 = vmatpush.msra.mxu0 0.0
        %1041 = vmatpush.msra.mxu0 0.0
        %1042 = vmatpush.msra.mxu0 0.0
        %1043 = vmatpush.msra.mxu0 0.0
        %1044 = vmatpush.msra.mxu0 0.0
        %1045 = vmatpush.msra.mxu0 0.0
        %1046 = vmatpush.msra.mxu0 0.0
        %1047 = vmatpush.msra.mxu0 0.0
        %1048 = vmatpush.msra.mxu0 0.0
        %1049 = vmatpush.msra.mxu0 0.0
        %1050 = vmatpush.msra.mxu0 0.0
        %1051 = vmatpush.msra.mxu0 %v1028
        %1052 = vmatpush.msra.mxu0 %v1027
        %1053 = vmatpush.msra.mxu0 %v1026
        %1054 = vmatpush.msra.mxu0 %v1025
        %1055 = vmatmul.f32.gmra.mxu0 %v1034
        %v1056 = vpop.f32.mrf.mxu0
        %v1057 = vadd.f32 %v1031, %v1056
        %1058 = vmatmul.f32.gmra.mxu0 %v1037
        %v1059 = vpop.f32.mrf.mxu0
        %v1060 = vadd.f32 %v1031, %v1059
        %1061 = vdwg.mxu0
        %s1062 = scalar_lea.vmem %s412, 16 [#allocation5]
        %v1063 = vld [vmem:[%s1062] sm:$0xff]
        %v1064 = vld [vmem:[%s1062 + $0x8] sm:$0xff]
        %v1065 = vld [vmem:[#allocation8] sm:$0xff]
        %v1066 = vld [vmem:[#allocation8 + $0x8] sm:$0xff]
        %v1067 = vld [vmem:[#allocation8 + $0x10] sm:$0xff]
        %v1068 = vld [vmem:[#allocation8 + $0x18] sm:$0xff]
        %v1069 = vld [vmem:[%s5] sm:$0x1]
        %v1071 = vperm.slane %v1069, 0
        %v1074 = vsel %vm502, %v1063, 0
        %v1077 = vsel %vm502, %v1064, 0
        %1079 = vmatpush.msra.mxu0 0.0
        %1080 = vmatpush.msra.mxu0 0.0
        %1081 = vmatpush.msra.mxu0 0.0
        %1082 = vmatpush.msra.mxu0 0.0
        %1083 = vmatpush.msra.mxu0 0.0
        %1084 = vmatpush.msra.mxu0 0.0
        %1085 = vmatpush.msra.mxu0 0.0
        %1086 = vmatpush.msra.mxu0 0.0
        %1087 = vmatpush.msra.mxu0 0.0
        %1088 = vmatpush.msra.mxu0 0.0
        %1089 = vmatpush.msra.mxu0 0.0
        %1090 = vmatpush.msra.mxu0 0.0
        %1091 = vmatpush.msra.mxu0 %v1068
        %1092 = vmatpush.msra.mxu0 %v1067
        %1093 = vmatpush.msra.mxu0 %v1066
        %1094 = vmatpush.msra.mxu0 %v1065
        %1095 = vmatmul.f32.gmra.mxu0 %v1074
        %v1096 = vpop.f32.mrf.mxu0
        %v1097 = vadd.f32 %v1071, %v1096
        %1098 = vmatmul.f32.gmra.mxu0 %v1077
        %v1099 = vpop.f32.mrf.mxu0
        %v1100 = vadd.f32 %v1071, %v1099
        %1101 = vdwg.mxu0
        %v1102 = vld [vmem:[#allocation10] sm:$0xff]
        %v1103 = vld [vmem:[#allocation10 + $0x8] sm:$0xff]
        %v1105 = vsel %vm573, %v1057, 0
        %v1108 = vsel %vm573, %v1060, 0
        %v1111 = vsel %vm573, %v1097, 0
        %v1114 = vsel %vm573, %v1100, 0
        %1116 = vmatpush.xpose.msra.mxu0 0.0
        %1117 = vmatpush.xpose.msra.mxu0 0.0
        %1118 = vmatpush.xpose.msra.mxu0 0.0
        %1119 = vmatpush.xpose.msra.mxu0 0.0
        %1120 = vmatpush.xpose.msra.mxu0 0.0
        %1121 = vmatpush.xpose.msra.mxu0 0.0
        %1122 = vmatpush.xpose.msra.mxu0 0.0
        %1123 = vmatpush.xpose.msra.mxu0 0.0
        %1124 = vmatpush.xpose.msra.mxu0 0.0
        %1125 = vmatpush.xpose.msra.mxu0 0.0
        %1126 = vmatpush.xpose.msra.mxu0 0.0
        %1127 = vmatpush.xpose.msra.mxu0 0.0
        %1128 = vmatpush.xpose.msra.mxu0 0.0
        %1129 = vmatpush.xpose.msra.mxu0 0.0
        %1130 = vmatpush.xpose.msra.mxu0 %v1114
        %1131 = vmatpush.xpose.msra.mxu0 %v1111
        %1132 = vmatmul.f32.gmra.mxu0 %v1105
        %v1133 = vpop.f32.mrf.mxu0
        %v1134 = vadd.f32 %v1102, %v1133
        %1135 = vmatmul.f32.gmra.mxu0 %v1108
        %v1136 = vpop.f32.mrf.mxu0
        %v1137 = vadd.f32 %v1103, %v1136
        %1138 = vdwg.mxu0
        %v1139 = vsel %vm609, %v1134, -inf
        %1140 = vmax.xlane.f32.xlu0 %v1139
        %v1141 = vpop.xlane.xlu0 %1140
        %v1142 = vsel %vm609, %v1137, -inf
        %1143 = vmax.xlane.f32.xlu0 %v1142
        %v1144 = vpop.xlane.xlu0 %1143
        %v1145 = vsub.f32 %v1134, %v1141
        %v1146 = vsub.f32 %v1137, %v1144
        %v1147 = vmul.f32 %v1145, 1.442695
        %v1148 = vpow.pop %v1147
        %v1149 = vmul.f32 %v1146, 1.442695
        %v1150 = vpow.pop %v1149
        %v1151 = vsel %vm609, %v1148, 0.0
        %1152 = vadd.xlane.f32.xlu0 %v1151
        %v1153 = vpop.xlane.xlu0 %1152
        %v1154 = vsel %vm609, %v1150, 0.0
        %1155 = vadd.xlane.f32.xlu0 %v1154
        %v1156 = vpop.xlane.xlu0 %1155
        %v1157 = vrcp.pop %v1153
        %v1158 = vrcp.pop %v1156
        %v1159 = vmul.f32 %v1148, %v1157
        %v1160 = vmul.f32 %v1150, %v1158
        %s1161 = scalar_lea.vmem %s467, 64 [#allocation13]
        %1162 = vst.msk [vmem:[%s1161] sm:$0xff] %vm609, %v1159
        %1163 = vst.msk [vmem:[%s1161 + $0x8] sm:$0xff] %vm609, %v1160
        %1164 = vrot.lane.b32.xlu0 %v1097, 96
        %v1165 = vpop.permute.xlu0 %1164
        %1166 = vrot.lane.b32.xlu0 %v1100, 96
        %v1167 = vpop.permute.xlu0 %1166
        %v1171 = vsel %vm609, %v1159, 0
        %v1174 = vsel %vm609, %v1160, 0
        %1176 = vmatpush.msra.mxu0 0.0
        %1177 = vmatpush.msra.mxu0 0.0
        %1178 = vmatpush.msra.mxu0 0.0
        %1179 = vmatpush.msra.mxu0 0.0
        %1180 = vmatpush.msra.mxu0 0.0
        %1181 = vmatpush.msra.mxu0 0.0
        %1182 = vmatpush.msra.mxu0 0.0
        %1183 = vmatpush.msra.mxu0 0.0
        %1184 = vmatpush.msra.mxu0 0.0
        %1185 = vmatpush.msra.mxu0 0.0
        %1186 = vmatpush.msra.mxu0 0.0
        %1187 = vmatpush.msra.mxu0 0.0
        %1188 = vmatpush.msra.mxu0 0.0
        %1189 = vmatpush.msra.mxu0 0.0
        %1190 = vmatpush.msra.mxu0 %v1167
        %1191 = vmatpush.msra.mxu0 %v1165
        %1192 = vmatmul.f32.gmra.mxu0 %v1171
        %v1193 = vpop.f32.mrf.mxu0
        %v1194 = vadd.f32 0.0, %v1193
        %1195 = vmatmul.f32.gmra.mxu0 %v1174
        %v1196 = vpop.f32.mrf.mxu0
        %v1197 = vadd.f32 0.0, %v1196
        %1198 = vdwg.mxu0
        %v1199 = vld [vmem:[%s669] sm:$0xff]
        %v1200 = vld [vmem:[%s669 + $0x8] sm:$0xff]
        %1201 = vrot.lane.b32.xlu0 %v1057, 120
        %v1202 = vpop.permute.xlu0 %1201
        %1203 = vrot.lane.b32.xlu0 %v1060, 120
        %v1204 = vpop.permute.xlu0 %1203
        %1205 = vrot.lane.b32.xlu0 %v1097, 120
        %v1206 = vpop.permute.xlu0 %1205
        %1207 = vrot.lane.b32.xlu0 %v1100, 120
        %v1208 = vpop.permute.xlu0 %1207
        %v1209 = vsel %vm573, %v1202, 0
        %v1211 = vsel %vm573, %v1204, 0
        %v1213 = vsel %vm573, %v1206, 0
        %v1215 = vsel %vm573, %v1208, 0
        %1217 = vmatpush.xpose.msra.mxu0 0.0
        %1218 = vmatpush.xpose.msra.mxu0 0.0
        %1219 = vmatpush.xpose.msra.mxu0 0.0
        %1220 = vmatpush.xpose.msra.mxu0 0.0
        %1221 = vmatpush.xpose.msra.mxu0 0.0
        %1222 = vmatpush.xpose.msra.mxu0 0.0
        %1223 = vmatpush.xpose.msra.mxu0 0.0
        %1224 = vmatpush.xpose.msra.mxu0 0.0
        %1225 = vmatpush.xpose.msra.mxu0 0.0
        %1226 = vmatpush.xpose.msra.mxu0 0.0
        %1227 = vmatpush.xpose.msra.mxu0 0.0
        %1228 = vmatpush.xpose.msra.mxu0 0.0
        %1229 = vmatpush.xpose.msra.mxu0 0.0
        %1230 = vmatpush.xpose.msra.mxu0 0.0
        %1231 = vmatpush.xpose.msra.mxu0 %v1215
        %1232 = vmatpush.xpose.msra.mxu0 %v1213
        %1233 = vmatmul.f32.gmra.mxu0 %v1209
        %v1234 = vpop.f32.mrf.mxu0
        %v1235 = vadd.f32 %v1199, %v1234
        %1236 = vmatmul.f32.gmra.mxu0 %v1211
        %v1237 = vpop.f32.mrf.mxu0
        %v1238 = vadd.f32 %v1200, %v1237
        %1239 = vdwg.mxu0
        %v1240 = vsel %vm609, %v1235, -inf
        %1241 = vmax.xlane.f32.xlu0 %v1240
        %v1242 = vpop.xlane.xlu0 %1241
        %v1243 = vsel %vm609, %v1238, -inf
        %1244 = vmax.xlane.f32.xlu0 %v1243
        %v1245 = vpop.xlane.xlu0 %1244
        %v1246 = vsub.f32 %v1235, %v1242
        %v1247 = vsub.f32 %v1238, %v1245
        %v1248 = vmul.f32 %v1246, 1.442695
        %v1249 = vpow.pop %v1248
        %v1250 = vmul.f32 %v1247, 1.442695
        %v1251 = vpow.pop %v1250
        %v1252 = vsel %vm609, %v1249, 0.0
        %1253 = vadd.xlane.f32.xlu0 %v1252
        %v1254 = vpop.xlane.xlu0 %1253
        %v1255 = vsel %vm609, %v1251, 0.0
        %1256 = vadd.xlane.f32.xlu0 %v1255
        %v1257 = vpop.xlane.xlu0 %1256
        %v1258 = vrcp.pop %v1254
        %v1259 = vrcp.pop %v1257
        %v1260 = vmul.f32 %v1249, %v1258
        %v1261 = vmul.f32 %v1251, %v1259
        %s1262 = scalar_lea.vmem %s467, 80 [#allocation13]
        %1263 = vst.msk [vmem:[%s1262] sm:$0xff] %vm609, %v1260
        %1264 = vst.msk [vmem:[%s1262 + $0x8] sm:$0xff] %vm609, %v1261
        %1265 = vrot.lane.b32.xlu0 %v1097, 88
        %v1266 = vpop.permute.xlu0 %1265
        %1267 = vrot.lane.b32.xlu0 %v1100, 88
        %v1268 = vpop.permute.xlu0 %1267
        %v1272 = vsel %vm609, %v1260, 0
        %v1275 = vsel %vm609, %v1261, 0
        %1277 = vmatpush.msra.mxu0 0.0
        %1278 = vmatpush.msra.mxu0 0.0
        %1279 = vmatpush.msra.mxu0 0.0
        %1280 = vmatpush.msra.mxu0 0.0
        %1281 = vmatpush.msra.mxu0 0.0
        %1282 = vmatpush.msra.mxu0 0.0
        %1283 = vmatpush.msra.mxu0 0.0
        %1284 = vmatpush.msra.mxu0 0.0
        %1285 = vmatpush.msra.mxu0 0.0
        %1286 = vmatpush.msra.mxu0 0.0
        %1287 = vmatpush.msra.mxu0 0.0
        %1288 = vmatpush.msra.mxu0 0.0
        %1289 = vmatpush.msra.mxu0 0.0
        %1290 = vmatpush.msra.mxu0 0.0
        %1291 = vmatpush.msra.mxu0 %v1268
        %1292 = vmatpush.msra.mxu0 %v1266
        %1293 = vmatmul.f32.gmra.mxu0 %v1272
        %v1294 = vpop.f32.mrf.mxu0
        %v1295 = vadd.f32 0.0, %v1294
        %1296 = vmatmul.f32.gmra.mxu0 %v1275
        %v1297 = vpop.f32.mrf.mxu0
        %v1298 = vadd.f32 0.0, %v1297
        %1299 = vdwg.mxu0
        %v1300 = vld [vmem:[%s771] sm:$0xff]
        %v1301 = vld [vmem:[%s771 + $0x8] sm:$0xff]
        %1302 = vrot.lane.b32.xlu0 %v1057, 112
        %v1303 = vpop.permute.xlu0 %1302
        %1304 = vrot.lane.b32.xlu0 %v1060, 112
        %v1305 = vpop.permute.xlu0 %1304
        %1306 = vrot.lane.b32.xlu0 %v1097, 112
        %v1307 = vpop.permute.xlu0 %1306
        %1308 = vrot.lane.b32.xlu0 %v1100, 112
        %v1309 = vpop.permute.xlu0 %1308
        %v1310 = vsel %vm573, %v1303, 0
        %v1312 = vsel %vm573, %v1305, 0
        %v1314 = vsel %vm573, %v1307, 0
        %v1316 = vsel %vm573, %v1309, 0
        %1318 = vmatpush.xpose.msra.mxu0 0.0
        %1319 = vmatpush.xpose.msra.mxu0 0.0
        %1320 = vmatpush.xpose.msra.mxu0 0.0
        %1321 = vmatpush.xpose.msra.mxu0 0.0
        %1322 = vmatpush.xpose.msra.mxu0 0.0
        %1323 = vmatpush.xpose.msra.mxu0 0.0
        %1324 = vmatpush.xpose.msra.mxu0 0.0
        %1325 = vmatpush.xpose.msra.mxu0 0.0
        %1326 = vmatpush.xpose.msra.mxu0 0.0
        %1327 = vmatpush.xpose.msra.mxu0 0.0
        %1328 = vmatpush.xpose.msra.mxu0 0.0
        %1329 = vmatpush.xpose.msra.mxu0 0.0
        %1330 = vmatpush.xpose.msra.mxu0 0.0
        %1331 = vmatpush.xpose.msra.mxu0 0.0
        %1332 = vmatpush.xpose.msra.mxu0 %v1316
        %1333 = vmatpush.xpose.msra.mxu0 %v1314
        %1334 = vmatmul.f32.gmra.mxu0 %v1310
        %v1335 = vpop.f32.mrf.mxu0
        %v1336 = vadd.f32 %v1300, %v1335
        %1337 = vmatmul.f32.gmra.mxu0 %v1312
        %v1338 = vpop.f32.mrf.mxu0
        %v1339 = vadd.f32 %v1301, %v1338
        %1340 = vdwg.mxu0
        %v1341 = vsel %vm609, %v1336, -inf
        %1342 = vmax.xlane.f32.xlu0 %v1341
        %v1343 = vpop.xlane.xlu0 %1342
        %v1344 = vsel %vm609, %v1339, -inf
        %1345 = vmax.xlane.f32.xlu0 %v1344
        %v1346 = vpop.xlane.xlu0 %1345
        %v1347 = vsub.f32 %v1336, %v1343
        %v1348 = vsub.f32 %v1339, %v1346
        %v1349 = vmul.f32 %v1347, 1.442695
        %v1350 = vpow.pop %v1349
        %v1351 = vmul.f32 %v1348, 1.442695
        %v1352 = vpow.pop %v1351
        %v1353 = vsel %vm609, %v1350, 0.0
        %1354 = vadd.xlane.f32.xlu0 %v1353
        %v1355 = vpop.xlane.xlu0 %1354
        %v1356 = vsel %vm609, %v1352, 0.0
        %1357 = vadd.xlane.f32.xlu0 %v1356
        %v1358 = vpop.xlane.xlu0 %1357
        %v1359 = vrcp.pop %v1355
        %v1360 = vrcp.pop %v1358
        %v1361 = vmul.f32 %v1350, %v1359
        %v1362 = vmul.f32 %v1352, %v1360
        %s1363 = scalar_lea.vmem %s467, 96 [#allocation13]
        %1364 = vst.msk [vmem:[%s1363] sm:$0xff] %vm609, %v1361
        %1365 = vst.msk [vmem:[%s1363 + $0x8] sm:$0xff] %vm609, %v1362
        %1366 = vrot.lane.b32.xlu0 %v1097, 80
        %v1367 = vpop.permute.xlu0 %1366
        %1368 = vrot.lane.b32.xlu0 %v1100, 80
        %v1369 = vpop.permute.xlu0 %1368
        %v1373 = vsel %vm609, %v1361, 0
        %v1376 = vsel %vm609, %v1362, 0
        %1378 = vmatpush.msra.mxu0 0.0
        %1379 = vmatpush.msra.mxu0 0.0
        %1380 = vmatpush.msra.mxu0 0.0
        %1381 = vmatpush.msra.mxu0 0.0
        %1382 = vmatpush.msra.mxu0 0.0
        %1383 = vmatpush.msra.mxu0 0.0
        %1384 = vmatpush.msra.mxu0 0.0
        %1385 = vmatpush.msra.mxu0 0.0
        %1386 = vmatpush.msra.mxu0 0.0
        %1387 = vmatpush.msra.mxu0 0.0
        %1388 = vmatpush.msra.mxu0 0.0
        %1389 = vmatpush.msra.mxu0 0.0
        %1390 = vmatpush.msra.mxu0 0.0
        %1391 = vmatpush.msra.mxu0 0.0
        %1392 = vmatpush.msra.mxu0 %v1369
        %1393 = vmatpush.msra.mxu0 %v1367
        %1394 = vmatmul.f32.gmra.mxu0 %v1373
        %v1395 = vpop.f32.mrf.mxu0
        %v1396 = vadd.f32 0.0, %v1395
        %1397 = vmatmul.f32.gmra.mxu0 %v1376
        %v1398 = vpop.f32.mrf.mxu0
        %v1399 = vadd.f32 0.0, %v1398
        %1400 = vdwg.mxu0
        %v1401 = vld [vmem:[%s873] sm:$0xff]
        %v1402 = vld [vmem:[%s873 + $0x8] sm:$0xff]
        %1403 = vrot.lane.b32.xlu0 %v1057, 104
        %v1404 = vpop.permute.xlu0 %1403
        %1405 = vrot.lane.b32.xlu0 %v1060, 104
        %v1406 = vpop.permute.xlu0 %1405
        %1407 = vrot.lane.b32.xlu0 %v1097, 104
        %v1408 = vpop.permute.xlu0 %1407
        %1409 = vrot.lane.b32.xlu0 %v1100, 104
        %v1410 = vpop.permute.xlu0 %1409
        %v1411 = vsel %vm573, %v1404, 0
        %v1413 = vsel %vm573, %v1406, 0
        %v1415 = vsel %vm573, %v1408, 0
        %v1417 = vsel %vm573, %v1410, 0
        %1419 = vmatpush.xpose.msra.mxu0 0.0
        %1420 = vmatpush.xpose.msra.mxu0 0.0
        %1421 = vmatpush.xpose.msra.mxu0 0.0
        %1422 = vmatpush.xpose.msra.mxu0 0.0
        %1423 = vmatpush.xpose.msra.mxu0 0.0
        %1424 = vmatpush.xpose.msra.mxu0 0.0
        %1425 = vmatpush.xpose.msra.mxu0 0.0
        %1426 = vmatpush.xpose.msra.mxu0 0.0
        %1427 = vmatpush.xpose.msra.mxu0 0.0
        %1428 = vmatpush.xpose.msra.mxu0 0.0
        %1429 = vmatpush.xpose.msra.mxu0 0.0
        %1430 = vmatpush.xpose.msra.mxu0 0.0
        %1431 = vmatpush.xpose.msra.mxu0 0.0
        %1432 = vmatpush.xpose.msra.mxu0 0.0
        %1433 = vmatpush.xpose.msra.mxu0 %v1417
        %1434 = vmatpush.xpose.msra.mxu0 %v1415
        %1435 = vmatmul.f32.gmra.mxu0 %v1411
        %v1436 = vpop.f32.mrf.mxu0
        %v1437 = vadd.f32 %v1401, %v1436
        %1438 = vmatmul.f32.gmra.mxu0 %v1413
        %v1439 = vpop.f32.mrf.mxu0
        %v1440 = vadd.f32 %v1402, %v1439
        %1441 = vdwg.mxu0
        %v1442 = vsel %vm609, %v1437, -inf
        %1443 = vmax.xlane.f32.xlu0 %v1442
        %v1444 = vpop.xlane.xlu0 %1443
        %v1445 = vsel %vm609, %v1440, -inf
        %1446 = vmax.xlane.f32.xlu0 %v1445
        %v1447 = vpop.xlane.xlu0 %1446
        %v1448 = vsub.f32 %v1437, %v1444
        %v1449 = vsub.f32 %v1440, %v1447
        %v1450 = vmul.f32 %v1448, 1.442695
        %v1451 = vpow.pop %v1450
        %v1452 = vmul.f32 %v1449, 1.442695
        %v1453 = vpow.pop %v1452
        %v1454 = vsel %vm609, %v1451, 0.0
        %1455 = vadd.xlane.f32.xlu0 %v1454
        %v1456 = vpop.xlane.xlu0 %1455
        %v1457 = vsel %vm609, %v1453, 0.0
        %1458 = vadd.xlane.f32.xlu0 %v1457
        %v1459 = vpop.xlane.xlu0 %1458
        %v1460 = vrcp.pop %v1456
        %v1461 = vrcp.pop %v1459
        %v1462 = vmul.f32 %v1451, %v1460
        %v1463 = vmul.f32 %v1453, %v1461
        %s1464 = scalar_lea.vmem %s467, 112 [#allocation13]
        %1465 = vst.msk [vmem:[%s1464] sm:$0xff] %vm609, %v1462
        %1466 = vst.msk [vmem:[%s1464 + $0x8] sm:$0xff] %vm609, %v1463
        %1467 = vrot.lane.b32.xlu0 %v1097, 72
        %v1468 = vpop.permute.xlu0 %1467
        %1469 = vrot.lane.b32.xlu0 %v1100, 72
        %v1470 = vpop.permute.xlu0 %1469
        %v1474 = vsel %vm609, %v1462, 0
        %v1477 = vsel %vm609, %v1463, 0
        %1479 = vmatpush.msra.mxu0 0.0
        %1480 = vmatpush.msra.mxu0 0.0
        %1481 = vmatpush.msra.mxu0 0.0
        %1482 = vmatpush.msra.mxu0 0.0
        %1483 = vmatpush.msra.mxu0 0.0
        %1484 = vmatpush.msra.mxu0 0.0
        %1485 = vmatpush.msra.mxu0 0.0
        %1486 = vmatpush.msra.mxu0 0.0
        %1487 = vmatpush.msra.mxu0 0.0
        %1488 = vmatpush.msra.mxu0 0.0
        %1489 = vmatpush.msra.mxu0 0.0
        %1490 = vmatpush.msra.mxu0 0.0
        %1491 = vmatpush.msra.mxu0 0.0
        %1492 = vmatpush.msra.mxu0 0.0
        %1493 = vmatpush.msra.mxu0 %v1470
        %1494 = vmatpush.msra.mxu0 %v1468
        %1495 = vmatmul.f32.gmra.mxu0 %v1474
        %v1496 = vpop.f32.mrf.mxu0
        %v1497 = vadd.f32 0.0, %v1496
        %1498 = vmatmul.f32.gmra.mxu0 %v1477
        %v1499 = vpop.f32.mrf.mxu0
        %v1500 = vadd.f32 0.0, %v1499
        %1501 = vdwg.mxu0
        %1504 = vrot.lane.b32.xlu0 %v1295, 8
        %v1505 = vpop.permute.xlu0 %1504
        %1506 = vrot.lane.b32.xlu0 %v1298, 8
        %v1507 = vpop.permute.xlu0 %1506
        %1512 = vrot.lane.b32.xlu0 %v1396, 16
        %v1513 = vpop.permute.xlu0 %1512
        %1514 = vrot.lane.b32.xlu0 %v1399, 16
        %v1515 = vpop.permute.xlu0 %1514
        %1520 = vrot.lane.b32.xlu0 %v1497, 24
        %v1521 = vpop.permute.xlu0 %1520
        %1522 = vrot.lane.b32.xlu0 %v1500, 24
        %v1523 = vpop.permute.xlu0 %1522
        %v1526 = vsel %vm573, %v1194, %v1505
        %v1527 = vsel %vm573, %v1197, %v1507
        %v1528 = vsel %vm609, %v1526, %v1513
        %v1529 = vsel %vm609, %v1527, %v1515
        %v1530 = vsel %vm1003, %v1528, %v1521
        %v1531 = vsel %vm1003, %v1529, %v1523
        %v1532 = vadd.f32 %v1006, %v1530
        %v1533 = vadd.f32 %v1007, %v1531
        %v1534 = vld [vmem:[#allocation11] sm:$0xff]
        %v1535 = vld [vmem:[#allocation11 + $0x8] sm:$0xff]
        %v1536 = vld [vmem:[#allocation11 + $0x10] sm:$0xff]
        %v1537 = vld [vmem:[#allocation11 + $0x18] sm:$0xff]
        %v1538 = vld [vmem:[%s8] sm:$0x1]
        %v1540 = vperm.slane %v1538, 0
        %v1543 = vsel %vm502, %v1532, 0
        %v1546 = vsel %vm502, %v1533, 0
        %1548 = vmatpush.msra.mxu0 0.0
        %1549 = vmatpush.msra.mxu0 0.0
        %1550 = vmatpush.msra.mxu0 0.0
        %1551 = vmatpush.msra.mxu0 0.0
        %1552 = vmatpush.msra.mxu0 0.0
        %1553 = vmatpush.msra.mxu0 0.0
        %1554 = vmatpush.msra.mxu0 0.0
        %1555 = vmatpush.msra.mxu0 0.0
        %1556 = vmatpush.msra.mxu0 0.0
        %1557 = vmatpush.msra.mxu0 0.0
        %1558 = vmatpush.msra.mxu0 0.0
        %1559 = vmatpush.msra.mxu0 0.0
        %1560 = vmatpush.msra.mxu0 %v1537
        %1561 = vmatpush.msra.mxu0 %v1536
        %1562 = vmatpush.msra.mxu0 %v1535
        %1563 = vmatpush.msra.mxu0 %v1534
        %1564 = vmatmul.f32.gmra.mxu0 %v1543
        %v1565 = vpop.f32.mrf.mxu0
        %v1566 = vadd.f32 %v1540, %v1565
        %1567 = vmatmul.f32.gmra.mxu0 %v1546
        %v1568 = vpop.f32.mrf.mxu0
        %v1569 = vadd.f32 %v1540, %v1568
        %1570 = vdwg.mxu0
        %1571 = vst.msk [vmem:[%s474] sm:$0xff] %vm502, %v1566
        %1572 = vst.msk [vmem:[%s474 + $0x8] sm:$0xff] %vm502, %v1569
        %s1573 = sand.u32 %s236, 1
        %s1574 = scalar_lea.sflag [#allocation4], %s1573
        %s1575 = sand.u32 %s236, 1
        %s1576 = smul.addr %s1575, 128
        %s1577 = scalar_lea.vmem [#allocation13], %s1576
        %s1578 = sand.u32 %s262, 1
        %s1579 = scalar_lea.sflag [#allocation15], %s1578
        %s1580 = sand.u32 %s262, 1
        %s1581 = smul.addr %s1580, 16
        %s1582 = scalar_lea.vmem [#allocation14], %s1581
        // Predicated region
        $region81: #{cross_window_attention.1} parent=55 // pred_check
          %p1583 = pneg %p246
        $region82: #{cross_window_attention.1} parent=55 // pred_check_branch
          %1585 = sbr.rel (%p1583) target = $region84
        $region83: #{cross_window_attention.1} parent=55 // pred_region
          %s1586 = smul.u32 2, %s34
          %1588 = vsyncadd %s1574, 0
          %s1589 = smul.addr %s1586, 8
          %s1590 = smul.addr %s1589, 8
          %s1591 = scalar_lea.hbm %s9, %s1590
          %s1592 = sshll.u32 %s1577, 4
          %s1593 = int_to_ptr.vmem [resolvable:$true] %s1592
          %s1594 = sshll.u32 %s1591, 4
          %s1595 = int_to_ptr.hbm [resolvable:$true] %s1594
          %1600 = dma.vmem_to_hbm [thread:$0]  %s1593, 2048, %s1595, %s1574, 128, 128, 8
        $region84: #{cross_window_attention.1} parent=55 // pred_fallthru
          _
        // Predicated region
        $region85: #{cross_window_attention.1} parent=55 // pred_check
          %p1601 = pneg %p272
        $region86: #{cross_window_attention.1} parent=55 // pred_check_branch
          %1603 = sbr.rel (%p1601) target = $region88
        $region87: #{cross_window_attention.1} parent=55 // pred_region
          %1605 = vsyncadd %s1579, 0
          %s1606 = smul.addr %s34, 2
          %s1607 = smul.addr %s1606, 8
          %s1608 = scalar_lea.hbm %s10, %s1607
          %s1609 = sshll.u32 %s1582, 4
          %s1610 = int_to_ptr.vmem [resolvable:$true] %s1609
          %s1611 = sshll.u32 %s1608, 4
          %s1612 = int_to_ptr.hbm [resolvable:$true] %s1611
          %1617 = dma.vmem_to_hbm [thread:$0]  %s1610, 256, %s1612, %s1579, 128, 128, 8
        $region88: #{cross_window_attention.1} parent=55 // pred_fallthru
          _
      $region56: #{cross_window_attention.1} parent=5 // pred_fallthru
        _
      %p1618 = scmp.le.s32.totalorder 2, %s29
      // Predicated region
      $region89: #{cross_window_attention.1} parent=5 // pred_check
        %p1619 = pneg %p1618
      $region90: #{cross_window_attention.1} parent=5 // pred_check_branch
        %1621 = sbr.rel (%p1619) target = $region92
      $region91: #{cross_window_attention.1} parent=5 // pred_region
        %s1622 = ssub.s32 %s29, 2
        // Predicated region
        $region93: #{cross_window_attention.1} parent=91 // pred_check
          %p1623 = pneg %p252
        $region94: #{cross_window_attention.1} parent=91 // pred_check_branch
          %1625 = sbr.rel (%p1623) target = $region96
        $region95: #{cross_window_attention.1} parent=91 // pred_region
          %s1626 = sand.u32 %s237, 1
          %s1627 = scalar_lea.sflag [#allocation4], %s1626
          %s1628 = sand.u32 %s237, 1
          %s1629 = smul.addr %s1628, 128
          %s1630 = scalar_lea.vmem [#allocation13], %s1629
          %1632 = dma.done %s1627, 2048
        $region96: #{cross_window_attention.1} parent=91 // pred_fallthru
          _
        // Predicated region
        $region97: #{cross_window_attention.1} parent=91 // pred_check
          %p1633 = pneg %p278
        $region98: #{cross_window_attention.1} parent=91 // pred_check_branch
          %1635 = sbr.rel (%p1633) target = $region100
        $region99: #{cross_window_attention.1} parent=91 // pred_region
          %s1636 = sand.u32 %s263, 1
          %s1637 = scalar_lea.sflag [#allocation15], %s1636
          %s1638 = sand.u32 %s263, 1
          %s1639 = smul.addr %s1638, 16
          %s1640 = scalar_lea.vmem [#allocation14], %s1639
          %1642 = dma.done %s1637, 256
        $region100: #{cross_window_attention.1} parent=91 // pred_fallthru
          _
      $region92: #{cross_window_attention.1} parent=5 // pred_fallthru
        _
    $region6: #{cross_window_attention.1} parent=1 // loop_footer
      %s33 = sadd.s32 1, %s29
    $region7: #{cross_window_attention.1} parent=1 // loop_footer_branch
      %28 = sbr.rel target = $region3
    $region8: #{cross_window_attention.1} parent=1 // loop_exit
      _
    %1643 = vsyncpa [#allocation3], 1
    %s1644 = scalar_lea.sflag [#allocation3], 1
    %1645 = vsyncpa %s1644, 1
    %1646 = vsyncpa [#allocation6], 1
    %s1647 = scalar_lea.sflag [#allocation6], 1
    %1648 = vsyncpa %s1647, 1
    %1649 = vsyncpa [#allocation9], 1
    %1650 = vsyncpa [#allocation12], 1
    %1651 = vsyncpa [#allocation4], 1
    %s1652 = scalar_lea.sflag [#allocation4], 1
    %1653 = vsyncpa %s1652, 1
    %1654 = vsyncpa [#allocation15], 1
    %s1655 = scalar_lea.sflag [#allocation15], 1
    %1656 = vsyncpa %s1655, 1

</llo_original>
